<compile_context>
chip_gen: v5e
topology: v5e:2x2
jax: 0.10.0
libtpu: 0.0.40
codegen_flags: <defaults>
</compile_context>

<pallas_src>
import functools
import math

import jax
import jax.numpy as jnp
from jax import lax
from jax.experimental import pallas as pl
from jax.experimental.pallas import tpu as pltpu


# ----------------------------------------------------------------------------
# Pallas kernel: full encoder stack for one batch tile.
# Grid = (num_batch_tiles, num_layers); the layer axis is "arbitrary" and the
# resident output block carries the residual stream across layer steps.
# ----------------------------------------------------------------------------
def encoder_stack_kernel(x_ref, mask_ref,
                         qkv_w_ref, out_w_ref, ff1_w_ref, ff2_w_ref, vec_ref,
                         y_ref, vals_scratch, *, num_heads):
    layer = pl.program_id(1)

    bt, S, D = x_ref.shape
    M = bt * S
    H = num_heads
    hd = D // H
    Hff = ff1_w_ref.shape[-1]

    # Layer 0: load the embedded input into the resident output block, which
    # doubles as the layer-to-layer residual carry (kept in VMEM; HBM writeback
    # only happens when the batch-tile index advances).
    @pl.when(layer == 0)
    def _init():
        y_ref[...] = x_ref[...]

    x = y_ref[...].reshape(M, D)                # (M, D) f32 residual stream
    mask = mask_ref[...]                        # (bt, S, S) additive mask

    # Packed per-layer vectors: one DMA instead of eight padded sub-tiles.
    vec = vec_ref[0]                            # (8, W) f32
    qkv_b = vec[0:1, :3 * D]
    out_b = vec[1:2, :D]
    g1 = vec[2:3, :D]
    b1 = vec[3:4, :D]
    ff1_b = vec[4:5, :Hff]
    ff2_b = vec[5:6, :D]
    g2 = vec[6:7, :D]
    b2 = vec[7:8, :D]

    def layer_norm(v, gamma, beta):
        # Single pass: mean and mean-of-squares row-reductions can issue to the
        # XLU concurrently.  Keep everything in f32 (cancellation safety).
        mu = jnp.mean(v, axis=-1, keepdims=True)
        ms = jnp.mean(v * v, axis=-1, keepdims=True)
        var = jnp.maximum(ms - mu * mu, 0.0)
        return gamma * ((v - mu) * lax.rsqrt(var + 1e-5)) + beta

    # ---- Multi-head self-attention ------------------------------------------
    # Dense QKV projection (bf16 operands, f32 MXU accumulation).  Weight
    # columns are pre-permuted host-side into contiguous [Q | K | V] blocks and
    # the 1/sqrt(head_dim) softmax scale is pre-folded into the Q columns.
    qkv = jnp.dot(x.astype(jnp.bfloat16), qkv_w_ref[0],
                  preferred_element_type=jnp.float32) + qkv_b
    q = qkv[:, 0 * D:1 * D].reshape(bt, S, D).astype(jnp.bfloat16)
    k = qkv[:, 1 * D:2 * D].reshape(bt, S, D).astype(jnp.bfloat16)
    v = qkv[:, 2 * D:3 * D].reshape(bt, S, D).astype(jnp.bfloat16)

    # Per-head attention with 3-D single-batch einsums (documented-safe form).
    # Each head's output is stored directly into the bf16 VMEM assembly buffer
    # so head outputs never stay live together and no concatenate is needed.
    # TODO(synk): folding heads into the einsum batch dim needs a 4-D
    # (0,2,1,3) transpose which Mosaic does not reliably lower at these sizes.
    for h in range(H):
        sl = slice(h * hd, (h + 1) * hd)
        s = jnp.einsum('bqd,bkd->bqk', q[:, :, sl], k[:, :, sl],
                       preferred_element_type=jnp.float32)
        s = s + mask                            # scale folded into Q weights
        s = s - jnp.max(s, axis=-1, keepdims=True)
        p = jnp.exp(s)
        denom = jnp.sum(p, axis=-1, keepdims=True)
        # Epsilon guards fully-masked rows (approx reciprocal of 0 -> inf).
        p = p * pl.reciprocal(denom + 1e-30, approx=True)
        o_h = jnp.einsum('bqk,bkd->bqd', p.astype(jnp.bfloat16), v[:, :, sl],
                         preferred_element_type=jnp.float32)
        vals_scratch[:, :, sl] = o_h.astype(jnp.bfloat16)

    values = vals_scratch[...].reshape(M, D)
    attn = jnp.dot(values, out_w_ref[0],
                   preferred_element_type=jnp.float32) + out_b

    # TODO(synk): nn.Dropout layers are identity here (inference/eval mode).
    x1 = layer_norm(attn + x, g1, b1)

    # ---- Position-wise feed-forward -----------------------------------------
    h1 = jnp.dot(x1.astype(jnp.bfloat16), ff1_w_ref[0],
                 preferred_element_type=jnp.float32) + ff1_b
    h1 = jnp.maximum(h1, 0.0)                   # ReLU
    ff = jnp.dot(h1.astype(jnp.bfloat16), ff2_w_ref[0],
                 preferred_element_type=jnp.float32) + ff2_b

    y = layer_norm(ff + x1, g2, b2)

    # Write the carry / final output (resident in VMEM across layer steps).
    y_ref[...] = y.reshape(bt, S, D).astype(y_ref.dtype)


# ----------------------------------------------------------------------------
# Wrapper: one pallas_call for the whole stack.
# ----------------------------------------------------------------------------
def encoder_stack(x, mask, params, num_heads, batch_tile=None,
                  vmem_limit_bytes=None):
    B, S, D = x.shape
    L = params["qkv_w"].shape[0]
    Hff = params["ff1_w"].shape[2]
    W = params["vecs"].shape[2]

    if batch_tile is None:
        # Target M = bt*S ~ 1024 so per-layer weight streaming is amortized
        # (v6e needs arithmetic intensity ~M >= ~650 flop/byte to be MXU-bound).
        # TODO(synk): on v7x prefer batch_tile <= B // 2 so the "parallel"
        # batch axis feeds both TensorCores; on v5e prefer the largest tile
        # VMEM allows (ideally nbt == 1) to minimize weight re-streaming.
        batch_tile = min(B, max(1, 1024 // S))
        while B % batch_tile:
            batch_tile -= 1
    assert B % batch_tile == 0, "batch must be divisible by batch_tile"
    nbt = B // batch_tile

    if vmem_limit_bytes is None:
        # Size the scoped VMEM limit from the actual tile footprint (the
        # scoped default of 16/32 MiB is the real ceiling, not physical VMEM).
        act = batch_tile * S * D * 4
        msk = batch_tile * S * S * 4
        wts = (D * 3 * D + D * D + D * Hff + Hff * D) * 2      # bf16
        vecb = 8 * W * 4
        est = 2 * (act + msk + wts + vecb) + act + batch_tile * S * D * 2
        vmem_limit_bytes = min(64 << 20, max(32 << 20, 2 * est + (8 << 20)))

    def act_spec(last):
        return pl.BlockSpec((batch_tile, S, last), lambda b, l: (b, 0, 0))

    def w_spec(shape):
        # One layer's weights per layer-grid step; double-buffered by Pallas so
        # the next layer's weights stream in while the current layer computes.
        return pl.BlockSpec((1,) + shape, lambda b, l: (l, 0, 0))

    in_specs = [
        act_spec(D),                              # embedded activations
        act_spec(S),                              # additive attention mask
        w_spec((D, 3 * D)),                       # qkv projection (bf16)
        w_spec((D, D)),                           # attention output proj (bf16)
        w_spec((D, Hff)),                         # ffn linear1 (bf16)
        w_spec((Hff, D)),                         # ffn linear2 (bf16)
        w_spec((8, W)),                           # packed bias / LN vectors
    ]
    out_spec = pl.BlockSpec((batch_tile, S, D), lambda b, l: (b, 0, 0))

    kernel = functools.partial(encoder_stack_kernel, num_heads=num_heads)
    return pl.pallas_call(
        kernel,
        out_shape=jax.ShapeDtypeStruct((B, S, D), jnp.float32),
        grid_spec=pltpu.PrefetchScalarGridSpec(
            num_scalar_prefetch=0,
            grid=(nbt, L),
            in_specs=in_specs,
            out_specs=out_spec,
            scratch_shapes=[
                pltpu.VMEM((batch_tile, S, D), jnp.bfloat16),   # head assembly
            ],
        ),
        compiler_params=pltpu.CompilerParams(
            dimension_semantics=("parallel", "arbitrary"),
            vmem_limit_bytes=int(vmem_limit_bytes)),
    )(x, mask,
      params["qkv_w"], params["out_w"], params["ff1_w"], params["ff2_w"],
      params["vecs"])


# ----------------------------------------------------------------------------
# Host-side glue: tokenization, embedding, positional encoding, parameters.
# ----------------------------------------------------------------------------
def positional_encoding(max_seq_len, d_model):
    # Matches PositionalEncoding: interleaved [sin, cos, sin, cos, ...].
    even_i = jnp.arange(0, d_model, 2, dtype=jnp.float32)
    denom = jnp.power(10000.0, even_i / d_model)
    position = jnp.arange(max_seq_len, dtype=jnp.float32)[:, None]
    even_pe = jnp.sin(position / denom)
    odd_pe = jnp.cos(position / denom)
    stacked = jnp.stack([even_pe, odd_pe], axis=2)           # (S, D/2, 2)
    return stacked.reshape(max_seq_len, d_model)


def batch_tokenize(batch, language_to_index, max_seq_len,
                   START_TOKEN, END_TOKEN, PADDING_TOKEN,
                   start_token, end_token):
    # Python-side string processing (same as SentenceEmbedding.batch_tokenize).
    rows = []
    for sentence in batch:
        idx = [language_to_index[tok] for tok in list(sentence)]
        if start_token:
            idx.insert(0, language_to_index[START_TOKEN])
        if end_token:
            idx.append(language_to_index[END_TOKEN])
        while len(idx) < max_seq_len:
            idx.append(language_to_index[PADDING_TOKEN])
        rows.append(idx)
    return jnp.array(rows, dtype=jnp.int32)


def qkv_column_permutation(num_heads, head_dim):
    """The tutorial-style MHA layout has, per head h, columns [q_h | k_h | v_h]
    interleaved across heads.  Returns column indices that regroup them into
    contiguous [Q_all_heads | K_all_heads | V_all_heads] blocks.
    NOTE: this matches Transformer.py's reshape(...,H,3*hd).chunk(3) layout,
    not torch.nn.MultiheadAttention's contiguous in_proj layout."""
    idx = []
    for part in range(3):                       # 0: q, 1: k, 2: v
        for h in range(num_heads):
            base = h * 3 * head_dim + part * head_dim
            idx.extend(range(base, base + head_dim))
    return jnp.asarray(idx, dtype=jnp.int32)


def init_layer_params(key, d_model, ffn_hidden):
    ks = jax.random.split(key, 4)
    s = 0.05
    return {
        "qkv_w": s * jax.random.normal(ks[0], (d_model, 3 * d_model), jnp.float32),
        "qkv_b": jnp.zeros((1, 3 * d_model), jnp.float32),
        "out_w": s * jax.random.normal(ks[1], (d_model, d_model), jnp.float32),
        "out_b": jnp.zeros((1, d_model), jnp.float32),
        "g1": jnp.ones((1, d_model), jnp.float32),
        "b1": jnp.zeros((1, d_model), jnp.float32),
        "ff1_w": s * jax.random.normal(ks[2], (d_model, ffn_hidden), jnp.float32),
        "ff1_b": jnp.zeros((1, ffn_hidden), jnp.float32),
        "ff2_w": s * jax.random.normal(ks[3], (ffn_hidden, d_model), jnp.float32),
        "ff2_b": jnp.zeros((1, d_model), jnp.float32),
        "g2": jnp.ones((1, d_model), jnp.float32),
        "b2": jnp.zeros((1, d_model), jnp.float32),
    }


def prepare_stacked_params(layer_params, num_heads, d_model, ffn_hidden):
    """Stack per-layer params on a leading L axis, permute QKV columns into
    contiguous [Q|K|V], fold the softmax scale into the Q columns, cast matmul
    weights to bf16, and pack the 8 small vectors into one (L, 8, W) array."""
    perm = qkv_column_permutation(num_heads, d_model // num_heads)
    stacked = {k: jnp.stack([p[k] for p in layer_params], axis=0)
               for k in layer_params[0]}

    qkv_w = stacked["qkv_w"][:, :, perm]
    qkv_b = stacked["qkv_b"][:, :, perm]
    # Fold 1/sqrt(head_dim) into the Q block (first d_model columns).
    scale = 1.0 / math.sqrt(d_model // num_heads)
    qkv_w = qkv_w.at[:, :, :d_model].multiply(scale)
    qkv_b = qkv_b.at[:, :, :d_model].multiply(scale)

    # Pack biases / layer-norm params: rows are
    # [qkv_b, out_b, g1, b1, ff1_b, ff2_b, g2, b2], each right-padded to W.
    W = max(3 * d_model, ffn_hidden)

    def pad_row(a):
        return jnp.pad(a, ((0, 0), (0, 0), (0, W - a.shape[-1])))

    vecs = jnp.concatenate(
        [pad_row(v) for v in (qkv_b, stacked["out_b"], stacked["g1"],
                              stacked["b1"], stacked["ff1_b"],
                              stacked["ff2_b"], stacked["g2"],
                              stacked["b2"])],
        axis=1).astype(jnp.float32)              # (L, 8, W)

    return {
        "qkv_w": qkv_w.astype(jnp.bfloat16),
        "out_w": stacked["out_w"].astype(jnp.bfloat16),
        "ff1_w": stacked["ff1_w"].astype(jnp.bfloat16),
        "ff2_w": stacked["ff2_w"].astype(jnp.bfloat16),
        "vecs": vecs,
    }


def encoder_forward(sentences, self_attention_mask, start_token, end_token,
                    *, emb_table, pos_enc, stacked_params, num_heads,
                    language_to_index, max_seq_len,
                    START_TOKEN, END_TOKEN, PADDING_TOKEN):
    tokens = batch_tokenize(sentences, language_to_index, max_seq_len,
                            START_TOKEN, END_TOKEN, PADDING_TOKEN,
                            start_token, end_token)
    # TODO(synk): embedding gather + SentenceEmbedding dropout (identity in
    # eval) stay outside the kernel; the token gather has no tidy BlockSpec.
    x = jnp.take(emb_table, tokens, axis=0) + pos_enc[None, :, :]
    return encoder_stack(x, self_attention_mask, stacked_params, num_heads)


# ----------------------------------------------------------------------------
if __name__ == "__main__":
    # Small, module-consistent sizes.
    d_model = 32
    ffn_hidden = 64
    num_heads = 4
    num_layers = 2
    max_sequence_length = 8
    batch = 2

    START_TOKEN, END_TOKEN, PADDING_TOKEN = "<s>", "</s>", "<pad>"
    chars = list("abcdefghijklmnopqrstuvwxyz ")
    english_to_index = {t: i for i, t in
                        enumerate([START_TOKEN, END_TOKEN, PADDING_TOKEN] + chars)}
    vocab_size = len(english_to_index)

    key = jax.random.PRNGKey(0)
    k_emb, k_layers = jax.random.split(key)
    emb_table = 0.02 * jax.random.normal(k_emb, (vocab_size, d_model), jnp.float32)
    pos_enc = positional_encoding(max_sequence_length, d_model)
    layer_keys = jax.random.split(k_layers, num_layers)
    layer_params = [init_layer_params(k, d_model, ffn_hidden) for k in layer_keys]
    stacked_params = prepare_stacked_params(layer_params, num_heads,
                                            d_model, ffn_hidden)

    sentences = ["hello", "jax"]
    # Additive attention mask, shape (B, S, S); zeros = fully visible.
    self_attention_mask = jnp.zeros(
        (batch, max_sequence_length, max_sequence_length), jnp.float32)

    out = encoder_forward(
        sentences, self_attention_mask, start_token=True, end_token=True,
        emb_table=emb_table, pos_enc=pos_enc, stacked_params=stacked_params,
        num_heads=num_heads, language_to_index=english_to_index,
        max_seq_len=max_sequence_length,
        START_TOKEN=START_TOKEN, END_TOKEN=END_TOKEN,
        PADDING_TOKEN=PADDING_TOKEN)
    out = jax.block_until_ready(out)

    assert out.shape == (batch, max_sequence_length, d_model)
    assert bool(jnp.all(jnp.isfinite(out)))
    print("KERNEL_OK")
</pallas_src>

<mosaic_0001>
module attributes {stable_mosaic.version = 11 : i64} {
  func.func @encoder_stack_kernel(%arg0: i32, %arg1: i32, %arg2: memref<2x8x32xf32, #tpu.memory_space<vmem>>, %arg3: memref<2x8x8xf32, #tpu.memory_space<vmem>>, %arg4: memref<1x32x96xbf16, #tpu.memory_space<vmem>>, %arg5: memref<1x32x32xbf16, #tpu.memory_space<vmem>>, %arg6: memref<1x32x64xbf16, #tpu.memory_space<vmem>>, %arg7: memref<1x64x32xbf16, #tpu.memory_space<vmem>>, %arg8: memref<1x8x96xf32, #tpu.memory_space<vmem>>, %arg9: memref<2x8x32xf32, #tpu.memory_space<vmem>>, %arg10: memref<2x8x32xbf16, #tpu.memory_space<vmem>>) attributes {dimension_semantics = [#tpu.dimension_semantics<parallel>, #tpu.dimension_semantics<arbitrary>], iteration_bounds = array<i64: 1, 2>, scalar_prefetch = 0 : i64, scratch_operands = 1 : i64, tpu.core_type = #tpu.core_type<tc>, window_params = [{transform_indices = @transform_0, window_bounds = array<i64: 2, 8, 32>}, {transform_indices = @transform_1, window_bounds = array<i64: 2, 8, 8>}, {transform_indices = @transform_2, window_bounds = array<i64: 1, 32, 96>}, {transform_indices = @transform_3, window_bounds = array<i64: 1, 32, 32>}, {transform_indices = @transform_4, window_bounds = array<i64: 1, 32, 64>}, {transform_indices = @transform_5, window_bounds = array<i64: 1, 64, 32>}, {transform_indices = @transform_6, window_bounds = array<i64: 1, 8, 96>}, {transform_indices = @transform_7, window_bounds = array<i64: 2, 8, 32>}]} {
    %c0_i32 = arith.constant 0 : i32
    %0 = arith.cmpi eq, %arg1, %c0_i32 : i32
    %1 = arith.extui %0 : i1 to i32
    %c0_i32_0 = arith.constant 0 : i32
    %2 = arith.cmpi ne, %1, %c0_i32_0 : i32
    scf.if %2 {
      %c0_72 = arith.constant 0 : index
      %c0_73 = arith.constant 0 : index
      %c0_74 = arith.constant 0 : index
      %188 = vector.load %arg2[%c0_72, %c0_73, %c0_74] : memref<2x8x32xf32, #tpu.memory_space<vmem>>, vector<2x8x32xf32>
      %c0_75 = arith.constant 0 : index
      %c0_76 = arith.constant 0 : index
      %c0_77 = arith.constant 0 : index
      %189 = vector.load %arg9[%c0_75, %c0_76, %c0_77] : memref<2x8x32xf32, #tpu.memory_space<vmem>>, vector<2x8x32xf32>
      tpu.vector_store %arg9[%c0_75, %c0_76, %c0_77], %188 {strides = array<i32>} : memref<2x8x32xf32, #tpu.memory_space<vmem>>, vector<2x8x32xf32>,
    } else {
    }
    %c0 = arith.constant 0 : index
    %c0_1 = arith.constant 0 : index
    %c0_2 = arith.constant 0 : index
    %3 = vector.load %arg9[%c0, %c0_1, %c0_2] : memref<2x8x32xf32, #tpu.memory_space<vmem>>, vector<2x8x32xf32>
    %4 = vector.shape_cast %3 : vector<2x8x32xf32> to vector<16x32xf32>
    %c0_3 = arith.constant 0 : index
    %c0_4 = arith.constant 0 : index
    %c0_5 = arith.constant 0 : index
    %5 = vector.load %arg3[%c0_3, %c0_4, %c0_5] : memref<2x8x8xf32, #tpu.memory_space<vmem>>, vector<2x8x8xf32>
    %c0_6 = arith.constant 0 : index
    %c0_7 = arith.constant 0 : index
    %c0_8 = arith.constant 0 : index
    %6 = vector.load %arg8[%c0_6, %c0_7, %c0_8] : memref<1x8x96xf32, #tpu.memory_space<vmem>>, vector<1x8x96xf32>
    %7 = vector.shape_cast %6 : vector<1x8x96xf32> to vector<8x96xf32>
    %8 = vector.extract_strided_slice %7 {offsets = [0, 0], sizes = [1, 96], strides = [1, 1]} : vector<8x96xf32> to vector<1x96xf32>
    %9 = vector.extract_strided_slice %7 {offsets = [1, 0], sizes = [1, 32], strides = [1, 1]} : vector<8x96xf32> to vector<1x32xf32>
    %10 = vector.extract_strided_slice %7 {offsets = [2, 0], sizes = [1, 32], strides = [1, 1]} : vector<8x96xf32> to vector<1x32xf32>
    %11 = vector.extract_strided_slice %7 {offsets = [3, 0], sizes = [1, 32], strides = [1, 1]} : vector<8x96xf32> to vector<1x32xf32>
    %12 = vector.extract_strided_slice %7 {offsets = [4, 0], sizes = [1, 64], strides = [1, 1]} : vector<8x96xf32> to vector<1x64xf32>
    %13 = vector.extract_strided_slice %7 {offsets = [5, 0], sizes = [1, 32], strides = [1, 1]} : vector<8x96xf32> to vector<1x32xf32>
    %14 = vector.extract_strided_slice %7 {offsets = [6, 0], sizes = [1, 32], strides = [1, 1]} : vector<8x96xf32> to vector<1x32xf32>
    %15 = vector.extract_strided_slice %7 {offsets = [7, 0], sizes = [1, 32], strides = [1, 1]} : vector<8x96xf32> to vector<1x32xf32>
    %16 = arith.truncf %4 : vector<16x32xf32> to vector<16x32xbf16>
    %c0_9 = arith.constant 0 : index
    %c0_10 = arith.constant 0 : index
    %c0_11 = arith.constant 0 : index
    %17 = vector.load %arg4[%c0_9, %c0_10, %c0_11] : memref<1x32x96xbf16, #tpu.memory_space<vmem>>, vector<1x32x96xbf16>
    %18 = vector.shape_cast %17 : vector<1x32x96xbf16> to vector<32x96xbf16>
    %cst = arith.constant dense<0.000000e+00> : vector<16x96xf32>
    %19 = tpu.matmul %16, %18, %cst {dimension_numbers = #tpu.dot_dimension_numbers<[1], [0], [0], [1], [0, 0, 1, 1], [], []>} : vector<16x32xbf16>, vector<32x96xbf16>, vector<16x96xf32> -> vector<16x96xf32>
    %20 = vector.broadcast %8 : vector<1x96xf32> to vector<16x96xf32>
    %21 = arith.addf %19, %20 : vector<16x96xf32>
    %22 = vector.extract_strided_slice %21 {offsets = [0, 0], sizes = [16, 32], strides = [1, 1]} : vector<16x96xf32> to vector<16x32xf32>
    %23 = vector.shape_cast %22 : vector<16x32xf32> to vector<2x8x32xf32>
    %24 = arith.truncf %23 : vector<2x8x32xf32> to vector<2x8x32xbf16>
    %25 = vector.extract_strided_slice %21 {offsets = [0, 32], sizes = [16, 32], strides = [1, 1]} : vector<16x96xf32> to vector<16x32xf32>
    %26 = vector.shape_cast %25 : vector<16x32xf32> to vector<2x8x32xf32>
    %27 = arith.truncf %26 : vector<2x8x32xf32> to vector<2x8x32xbf16>
    %28 = vector.extract_strided_slice %21 {offsets = [0, 64], sizes = [16, 32], strides = [1, 1]} : vector<16x96xf32> to vector<16x32xf32>
    %29 = vector.shape_cast %28 : vector<16x32xf32> to vector<2x8x32xf32>
    %30 = arith.truncf %29 : vector<2x8x32xf32> to vector<2x8x32xbf16>
    %31 = vector.extract_strided_slice %24 {offsets = [0, 0, 0], sizes = [2, 8, 8], strides = [1, 1, 1]} : vector<2x8x32xbf16> to vector<2x8x8xbf16>
    %32 = vector.extract_strided_slice %27 {offsets = [0, 0, 0], sizes = [2, 8, 8], strides = [1, 1, 1]} : vector<2x8x32xbf16> to vector<2x8x8xbf16>
    "tpu.trace_start"() <{level = 10 : i32, message = "bqd,bkd->bqk"}> : () -> ()
    %cst_12 = arith.constant dense<0.000000e+00> : vector<2x8x8xf32>
    %33 = tpu.matmul %31, %32, %cst_12 {dimension_numbers = #tpu.dot_dimension_numbers<[2], [2], [1], [1], [0, 0, 0, 1, 1, 1], [0], [0]>} : vector<2x8x8xbf16>, vector<2x8x8xbf16>, vector<2x8x8xf32> -> vector<2x8x8xf32>
    "tpu.trace_stop"() : () -> ()
    %34 = arith.addf %33, %5 : vector<2x8x8xf32>
    %cst_13 = arith.constant dense<0xFF800000> : vector<2x8xf32>
    %35 = vector.multi_reduction <maximumf>, %34, %cst_13 [2] : vector<2x8x8xf32> to vector<2x8xf32>
    %36 = vector.shape_cast %35 : vector<2x8xf32> to vector<2x8x1xf32>
    %37 = vector.broadcast %36 : vector<2x8x1xf32> to vector<2x8x8xf32>
    %38 = arith.subf %34, %37 : vector<2x8x8xf32>
    %39 = math.exp %38 : vector<2x8x8xf32>
    %cst_14 = arith.constant dense<0.000000e+00> : vector<2x8xf32>
    %40 = vector.multi_reduction <add>, %39, %cst_14 [2] : vector<2x8x8xf32> to vector<2x8xf32>
    %41 = vector.shape_cast %40 : vector<2x8xf32> to vector<2x8x1xf32>
    %cst_15 = arith.constant 1.000000e-30 : f32
    %42 = vector.broadcast %cst_15 : f32 to vector<2x8x1xf32>
    %43 = arith.addf %41, %42 : vector<2x8x1xf32>
    %44 = tpu.reciprocal %43 {approx = true} : vector<2x8x1xf32> -> vector<2x8x1xf32>
    %45 = vector.broadcast %44 : vector<2x8x1xf32> to vector<2x8x8xf32>
    %46 = arith.mulf %39, %45 : vector<2x8x8xf32>
    %47 = arith.truncf %46 : vector<2x8x8xf32> to vector<2x8x8xbf16>
    %48 = vector.extract_strided_slice %30 {offsets = [0, 0, 0], sizes = [2, 8, 8], strides = [1, 1, 1]} : vector<2x8x32xbf16> to vector<2x8x8xbf16>
    "tpu.trace_start"() <{level = 10 : i32, message = "bqk,bkd->bqd"}> : () -> ()
    %cst_16 = arith.constant dense<0.000000e+00> : vector<2x8x8xf32>
    %49 = tpu.matmul %47, %48, %cst_16 {dimension_numbers = #tpu.dot_dimension_numbers<[2], [1], [1], [2], [0, 0, 0, 1, 1, 2], [0], [0]>} : vector<2x8x8xbf16>, vector<2x8x8xbf16>, vector<2x8x8xf32> -> vector<2x8x8xf32>
    "tpu.trace_stop"() : () -> ()
    %50 = arith.truncf %49 : vector<2x8x8xf32> to vector<2x8x8xbf16>
    %c0_17 = arith.constant 0 : index
    %c0_18 = arith.constant 0 : index
    %c0_19 = arith.constant 0 : index
    %51 = vector.load %arg10[%c0_17, %c0_18, %c0_19] : memref<2x8x32xbf16, #tpu.memory_space<vmem>>, vector<2x8x8xbf16>
    tpu.vector_store %arg10[%c0_17, %c0_18, %c0_19], %50 {strides = array<i32>} : memref<2x8x32xbf16, #tpu.memory_space<vmem>>, vector<2x8x8xbf16>,
    %52 = vector.extract_strided_slice %24 {offsets = [0, 0, 8], sizes = [2, 8, 8], strides = [1, 1, 1]} : vector<2x8x32xbf16> to vector<2x8x8xbf16>
    %53 = vector.extract_strided_slice %27 {offsets = [0, 0, 8], sizes = [2, 8, 8], strides = [1, 1, 1]} : vector<2x8x32xbf16> to vector<2x8x8xbf16>
    "tpu.trace_start"() <{level = 10 : i32, message = "bqd,bkd->bqk"}> : () -> ()
    %cst_20 = arith.constant dense<0.000000e+00> : vector<2x8x8xf32>
    %54 = tpu.matmul %52, %53, %cst_20 {dimension_numbers = #tpu.dot_dimension_numbers<[2], [2], [1], [1], [0, 0, 0, 1, 1, 1], [0], [0]>} : vector<2x8x8xbf16>, vector<2x8x8xbf16>, vector<2x8x8xf32> -> vector<2x8x8xf32>
    "tpu.trace_stop"() : () -> ()
    %55 = arith.addf %54, %5 : vector<2x8x8xf32>
    %cst_21 = arith.constant dense<0xFF800000> : vector<2x8xf32>
    %56 = vector.multi_reduction <maximumf>, %55, %cst_21 [2] : vector<2x8x8xf32> to vector<2x8xf32>
    %57 = vector.shape_cast %56 : vector<2x8xf32> to vector<2x8x1xf32>
    %58 = vector.broadcast %57 : vector<2x8x1xf32> to vector<2x8x8xf32>
    %59 = arith.subf %55, %58 : vector<2x8x8xf32>
    %60 = math.exp %59 : vector<2x8x8xf32>
    %cst_22 = arith.constant dense<0.000000e+00> : vector<2x8xf32>
    %61 = vector.multi_reduction <add>, %60, %cst_22 [2] : vector<2x8x8xf32> to vector<2x8xf32>
    %62 = vector.shape_cast %61 : vector<2x8xf32> to vector<2x8x1xf32>
    %cst_23 = arith.constant 1.000000e-30 : f32
    %63 = vector.broadcast %cst_23 : f32 to vector<2x8x1xf32>
    %64 = arith.addf %62, %63 : vector<2x8x1xf32>
    %65 = tpu.reciprocal %64 {approx = true} : vector<2x8x1xf32> -> vector<2x8x1xf32>
    %66 = vector.broadcast %65 : vector<2x8x1xf32> to vector<2x8x8xf32>
    %67 = arith.mulf %60, %66 : vector<2x8x8xf32>
    %68 = arith.truncf %67 : vector<2x8x8xf32> to vector<2x8x8xbf16>
    %69 = vector.extract_strided_slice %30 {offsets = [0, 0, 8], sizes = [2, 8, 8], strides = [1, 1, 1]} : vector<2x8x32xbf16> to vector<2x8x8xbf16>
    "tpu.trace_start"() <{level = 10 : i32, message = "bqk,bkd->bqd"}> : () -> ()
    %cst_24 = arith.constant dense<0.000000e+00> : vector<2x8x8xf32>
    %70 = tpu.matmul %68, %69, %cst_24 {dimension_numbers = #tpu.dot_dimension_numbers<[2], [1], [1], [2], [0, 0, 0, 1, 1, 2], [0], [0]>} : vector<2x8x8xbf16>, vector<2x8x8xbf16>, vector<2x8x8xf32> -> vector<2x8x8xf32>
    "tpu.trace_stop"() : () -> ()
    %71 = arith.truncf %70 : vector<2x8x8xf32> to vector<2x8x8xbf16>
    %c0_25 = arith.constant 0 : index
    %c0_26 = arith.constant 0 : index
    %c8 = arith.constant 8 : index
    %72 = vector.load %arg10[%c0_25, %c0_26, %c8] : memref<2x8x32xbf16, #tpu.memory_space<vmem>>, vector<2x8x8xbf16>
    tpu.vector_store %arg10[%c0_25, %c0_26, %c8], %71 {strides = array<i32>} : memref<2x8x32xbf16, #tpu.memory_space<vmem>>, vector<2x8x8xbf16>,
    %73 = vector.extract_strided_slice %24 {offsets = [0, 0, 16], sizes = [2, 8, 8], strides = [1, 1, 1]} : vector<2x8x32xbf16> to vector<2x8x8xbf16>
    %74 = vector.extract_strided_slice %27 {offsets = [0, 0, 16], sizes = [2, 8, 8], strides = [1, 1, 1]} : vector<2x8x32xbf16> to vector<2x8x8xbf16>
    "tpu.trace_start"() <{level = 10 : i32, message = "bqd,bkd->bqk"}> : () -> ()
    %cst_27 = arith.constant dense<0.000000e+00> : vector<2x8x8xf32>
    %75 = tpu.matmul %73, %74, %cst_27 {dimension_numbers = #tpu.dot_dimension_numbers<[2], [2], [1], [1], [0, 0, 0, 1, 1, 1], [0], [0]>} : vector<2x8x8xbf16>, vector<2x8x8xbf16>, vector<2x8x8xf32> -> vector<2x8x8xf32>
    "tpu.trace_stop"() : () -> ()
    %76 = arith.addf %75, %5 : vector<2x8x8xf32>
    %cst_28 = arith.constant dense<0xFF800000> : vector<2x8xf32>
    %77 = vector.multi_reduction <maximumf>, %76, %cst_28 [2] : vector<2x8x8xf32> to vector<2x8xf32>
    %78 = vector.shape_cast %77 : vector<2x8xf32> to vector<2x8x1xf32>
    %79 = vector.broadcast %78 : vector<2x8x1xf32> to vector<2x8x8xf32>
    %80 = arith.subf %76, %79 : vector<2x8x8xf32>
    %81 = math.exp %80 : vector<2x8x8xf32>
    %cst_29 = arith.constant dense<0.000000e+00> : vector<2x8xf32>
    %82 = vector.multi_reduction <add>, %81, %cst_29 [2] : vector<2x8x8xf32> to vector<2x8xf32>
    %83 = vector.shape_cast %82 : vector<2x8xf32> to vector<2x8x1xf32>
    %cst_30 = arith.constant 1.000000e-30 : f32
    %84 = vector.broadcast %cst_30 : f32 to vector<2x8x1xf32>
    %85 = arith.addf %83, %84 : vector<2x8x1xf32>
    %86 = tpu.reciprocal %85 {approx = true} : vector<2x8x1xf32> -> vector<2x8x1xf32>
    %87 = vector.broadcast %86 : vector<2x8x1xf32> to vector<2x8x8xf32>
    %88 = arith.mulf %81, %87 : vector<2x8x8xf32>
    %89 = arith.truncf %88 : vector<2x8x8xf32> to vector<2x8x8xbf16>
    %90 = vector.extract_strided_slice %30 {offsets = [0, 0, 16], sizes = [2, 8, 8], strides = [1, 1, 1]} : vector<2x8x32xbf16> to vector<2x8x8xbf16>
    "tpu.trace_start"() <{level = 10 : i32, message = "bqk,bkd->bqd"}> : () -> ()
    %cst_31 = arith.constant dense<0.000000e+00> : vector<2x8x8xf32>
    %91 = tpu.matmul %89, %90, %cst_31 {dimension_numbers = #tpu.dot_dimension_numbers<[2], [1], [1], [2], [0, 0, 0, 1, 1, 2], [0], [0]>} : vector<2x8x8xbf16>, vector<2x8x8xbf16>, vector<2x8x8xf32> -> vector<2x8x8xf32>
    "tpu.trace_stop"() : () -> ()
    %92 = arith.truncf %91 : vector<2x8x8xf32> to vector<2x8x8xbf16>
    %c0_32 = arith.constant 0 : index
    %c0_33 = arith.constant 0 : index
    %c16 = arith.constant 16 : index
    %93 = vector.load %arg10[%c0_32, %c0_33, %c16] : memref<2x8x32xbf16, #tpu.memory_space<vmem>>, vector<2x8x8xbf16>
    tpu.vector_store %arg10[%c0_32, %c0_33, %c16], %92 {strides = array<i32>} : memref<2x8x32xbf16, #tpu.memory_space<vmem>>, vector<2x8x8xbf16>,
    %94 = vector.extract_strided_slice %24 {offsets = [0, 0, 24], sizes = [2, 8, 8], strides = [1, 1, 1]} : vector<2x8x32xbf16> to vector<2x8x8xbf16>
    %95 = vector.extract_strided_slice %27 {offsets = [0, 0, 24], sizes = [2, 8, 8], strides = [1, 1, 1]} : vector<2x8x32xbf16> to vector<2x8x8xbf16>
    "tpu.trace_start"() <{level = 10 : i32, message = "bqd,bkd->bqk"}> : () -> ()
    %cst_34 = arith.constant dense<0.000000e+00> : vector<2x8x8xf32>
    %96 = tpu.matmul %94, %95, %cst_34 {dimension_numbers = #tpu.dot_dimension_numbers<[2], [2], [1], [1], [0, 0, 0, 1, 1, 1], [0], [0]>} : vector<2x8x8xbf16>, vector<2x8x8xbf16>, vector<2x8x8xf32> -> vector<2x8x8xf32>
    "tpu.trace_stop"() : () -> ()
    %97 = arith.addf %96, %5 : vector<2x8x8xf32>
    %cst_35 = arith.constant dense<0xFF800000> : vector<2x8xf32>
    %98 = vector.multi_reduction <maximumf>, %97, %cst_35 [2] : vector<2x8x8xf32> to vector<2x8xf32>
    %99 = vector.shape_cast %98 : vector<2x8xf32> to vector<2x8x1xf32>
    %100 = vector.broadcast %99 : vector<2x8x1xf32> to vector<2x8x8xf32>
    %101 = arith.subf %97, %100 : vector<2x8x8xf32>
    %102 = math.exp %101 : vector<2x8x8xf32>
    %cst_36 = arith.constant dense<0.000000e+00> : vector<2x8xf32>
    %103 = vector.multi_reduction <add>, %102, %cst_36 [2] : vector<2x8x8xf32> to vector<2x8xf32>
    %104 = vector.shape_cast %103 : vector<2x8xf32> to vector<2x8x1xf32>
    %cst_37 = arith.constant 1.000000e-30 : f32
    %105 = vector.broadcast %cst_37 : f32 to vector<2x8x1xf32>
    %106 = arith.addf %104, %105 : vector<2x8x1xf32>
    %107 = tpu.reciprocal %106 {approx = true} : vector<2x8x1xf32> -> vector<2x8x1xf32>
    %108 = vector.broadcast %107 : vector<2x8x1xf32> to vector<2x8x8xf32>
    %109 = arith.mulf %102, %108 : vector<2x8x8xf32>
    %110 = arith.truncf %109 : vector<2x8x8xf32> to vector<2x8x8xbf16>
    %111 = vector.extract_strided_slice %30 {offsets = [0, 0, 24], sizes = [2, 8, 8], strides = [1, 1, 1]} : vector<2x8x32xbf16> to vector<2x8x8xbf16>
    "tpu.trace_start"() <{level = 10 : i32, message = "bqk,bkd->bqd"}> : () -> ()
    %cst_38 = arith.constant dense<0.000000e+00> : vector<2x8x8xf32>
    %112 = tpu.matmul %110, %111, %cst_38 {dimension_numbers = #tpu.dot_dimension_numbers<[2], [1], [1], [2], [0, 0, 0, 1, 1, 2], [0], [0]>} : vector<2x8x8xbf16>, vector<2x8x8xbf16>, vector<2x8x8xf32> -> vector<2x8x8xf32>
    "tpu.trace_stop"() : () -> ()
    %113 = arith.truncf %112 : vector<2x8x8xf32> to vector<2x8x8xbf16>
    %c0_39 = arith.constant 0 : index
    %c0_40 = arith.constant 0 : index
    %c24 = arith.constant 24 : index
    %114 = vector.load %arg10[%c0_39, %c0_40, %c24] : memref<2x8x32xbf16, #tpu.memory_space<vmem>>, vector<2x8x8xbf16>
    tpu.vector_store %arg10[%c0_39, %c0_40, %c24], %113 {strides = array<i32>} : memref<2x8x32xbf16, #tpu.memory_space<vmem>>, vector<2x8x8xbf16>,
    %c0_41 = arith.constant 0 : index
    %c0_42 = arith.constant 0 : index
    %c0_43 = arith.constant 0 : index
    %115 = vector.load %arg10[%c0_41, %c0_42, %c0_43] : memref<2x8x32xbf16, #tpu.memory_space<vmem>>, vector<2x8x32xbf16>
    %116 = vector.shape_cast %115 : vector<2x8x32xbf16> to vector<16x32xbf16>
    %c0_44 = arith.constant 0 : index
    %c0_45 = arith.constant 0 : index
    %c0_46 = arith.constant 0 : index
    %117 = vector.load %arg5[%c0_44, %c0_45, %c0_46] : memref<1x32x32xbf16, #tpu.memory_space<vmem>>, vector<1x32x32xbf16>
    %118 = vector.shape_cast %117 : vector<1x32x32xbf16> to vector<32x32xbf16>
    %cst_47 = arith.constant dense<0.000000e+00> : vector<16x32xf32>
    %119 = tpu.matmul %116, %118, %cst_47 {dimension_numbers = #tpu.dot_dimension_numbers<[1], [0], [0], [1], [0, 0, 1, 1], [], []>} : vector<16x32xbf16>, vector<32x32xbf16>, vector<16x32xf32> -> vector<16x32xf32>
    %120 = vector.broadcast %9 : vector<1x32xf32> to vector<16x32xf32>
    %121 = arith.addf %119, %120 : vector<16x32xf32>
    %122 = arith.addf %121, %4 : vector<16x32xf32>
    %cst_48 = arith.constant dense<0.000000e+00> : vector<16xf32>
    %123 = vector.multi_reduction <add>, %122, %cst_48 [1] : vector<16x32xf32> to vector<16xf32>
    %124 = vector.shape_cast %123 : vector<16xf32> to vector<16x1xf32>
    %cst_49 = arith.constant 3.200000e+01 : f32
    %125 = vector.broadcast %cst_49 : f32 to vector<16x1xf32>
    %126 = arith.divf %124, %125 : vector<16x1xf32>
    %127 = arith.mulf %122, %122 : vector<16x32xf32>
    %cst_50 = arith.constant dense<0.000000e+00> : vector<16xf32>
    %128 = vector.multi_reduction <add>, %127, %cst_50 [1] : vector<16x32xf32> to vector<16xf32>
    %129 = vector.shape_cast %128 : vector<16xf32> to vector<16x1xf32>
    %cst_51 = arith.constant 3.200000e+01 : f32
    %130 = vector.broadcast %cst_51 : f32 to vector<16x1xf32>
    %131 = arith.divf %129, %130 : vector<16x1xf32>
    %132 = arith.mulf %126, %126 : vector<16x1xf32>
    %133 = arith.subf %131, %132 : vector<16x1xf32>
    %cst_52 = arith.constant 0.000000e+00 : f32
    %134 = vector.broadcast %cst_52 : f32 to vector<16x1xf32>
    %135 = arith.maximumf %133, %134 : vector<16x1xf32>
    %136 = vector.broadcast %126 : vector<16x1xf32> to vector<16x32xf32>
    %137 = arith.subf %122, %136 : vector<16x32xf32>
    %cst_53 = arith.constant 9.99999974E-6 : f32
    %138 = vector.broadcast %cst_53 : f32 to vector<16x1xf32>
    %139 = arith.addf %135, %138 : vector<16x1xf32>
    %140 = math.rsqrt %139 : vector<16x1xf32>
    %141 = vector.broadcast %140 : vector<16x1xf32> to vector<16x32xf32>
    %142 = arith.mulf %137, %141 : vector<16x32xf32>
    %143 = vector.broadcast %10 : vector<1x32xf32> to vector<16x32xf32>
    %144 = arith.mulf %143, %142 : vector<16x32xf32>
    %145 = vector.broadcast %11 : vector<1x32xf32> to vector<16x32xf32>
    %146 = arith.addf %144, %145 : vector<16x32xf32>
    %147 = arith.truncf %146 : vector<16x32xf32> to vector<16x32xbf16>
    %c0_54 = arith.constant 0 : index
    %c0_55 = arith.constant 0 : index
    %c0_56 = arith.constant 0 : index
    %148 = vector.load %arg6[%c0_54, %c0_55, %c0_56] : memref<1x32x64xbf16, #tpu.memory_space<vmem>>, vector<1x32x64xbf16>
    %149 = vector.shape_cast %148 : vector<1x32x64xbf16> to vector<32x64xbf16>
    %cst_57 = arith.constant dense<0.000000e+00> : vector<16x64xf32>
    %150 = tpu.matmul %147, %149, %cst_57 {dimension_numbers = #tpu.dot_dimension_numbers<[1], [0], [0], [1], [0, 0, 1, 1], [], []>} : vector<16x32xbf16>, vector<32x64xbf16>, vector<16x64xf32> -> vector<16x64xf32>
    %151 = vector.broadcast %12 : vector<1x64xf32> to vector<16x64xf32>
    %152 = arith.addf %150, %151 : vector<16x64xf32>
    %cst_58 = arith.constant 0.000000e+00 : f32
    %153 = vector.broadcast %cst_58 : f32 to vector<16x64xf32>
    %154 = arith.maximumf %152, %153 : vector<16x64xf32>
    %155 = arith.truncf %154 : vector<16x64xf32> to vector<16x64xbf16>
    %c0_59 = arith.constant 0 : index
    %c0_60 = arith.constant 0 : index
    %c0_61 = arith.constant 0 : index
    %156 = vector.load %arg7[%c0_59, %c0_60, %c0_61] : memref<1x64x32xbf16, #tpu.memory_space<vmem>>, vector<1x64x32xbf16>
    %157 = vector.shape_cast %156 : vector<1x64x32xbf16> to vector<64x32xbf16>
    %cst_62 = arith.constant dense<0.000000e+00> : vector<16x32xf32>
    %158 = tpu.matmul %155, %157, %cst_62 {dimension_numbers = #tpu.dot_dimension_numbers<[1], [0], [0], [1], [0, 0, 1, 1], [], []>} : vector<16x64xbf16>, vector<64x32xbf16>, vector<16x32xf32> -> vector<16x32xf32>
    %159 = vector.broadcast %13 : vector<1x32xf32> to vector<16x32xf32>
    %160 = arith.addf %158, %159 : vector<16x32xf32>
    %161 = arith.addf %160, %146 : vector<16x32xf32>
    %cst_63 = arith.constant dense<0.000000e+00> : vector<16xf32>
    %162 = vector.multi_reduction <add>, %161, %cst_63 [1] : vector<16x32xf32> to vector<16xf32>
    %163 = vector.shape_cast %162 : vector<16xf32> to vector<16x1xf32>
    %cst_64 = arith.constant 3.200000e+01 : f32
    %164 = vector.broadcast %cst_64 : f32 to vector<16x1xf32>
    %165 = arith.divf %163, %164 : vector<16x1xf32>
    %166 = arith.mulf %161, %161 : vector<16x32xf32>
    %cst_65 = arith.constant dense<0.000000e+00> : vector<16xf32>
    %167 = vector.multi_reduction <add>, %166, %cst_65 [1] : vector<16x32xf32> to vector<16xf32>
    %168 = vector.shape_cast %167 : vector<16xf32> to vector<16x1xf32>
    %cst_66 = arith.constant 3.200000e+01 : f32
    %169 = vector.broadcast %cst_66 : f32 to vector<16x1xf32>
    %170 = arith.divf %168, %169 : vector<16x1xf32>
    %171 = arith.mulf %165, %165 : vector<16x1xf32>
    %172 = arith.subf %170, %171 : vector<16x1xf32>
    %cst_67 = arith.constant 0.000000e+00 : f32
    %173 = vector.broadcast %cst_67 : f32 to vector<16x1xf32>
    %174 = arith.maximumf %172, %173 : vector<16x1xf32>
    %175 = vector.broadcast %165 : vector<16x1xf32> to vector<16x32xf32>
    %176 = arith.subf %161, %175 : vector<16x32xf32>
    %cst_68 = arith.constant 9.99999974E-6 : f32
    %177 = vector.broadcast %cst_68 : f32 to vector<16x1xf32>
    %178 = arith.addf %174, %177 : vector<16x1xf32>
    %179 = math.rsqrt %178 : vector<16x1xf32>
    %180 = vector.broadcast %179 : vector<16x1xf32> to vector<16x32xf32>
    %181 = arith.mulf %176, %180 : vector<16x32xf32>
    %182 = vector.broadcast %14 : vector<1x32xf32> to vector<16x32xf32>
    %183 = arith.mulf %182, %181 : vector<16x32xf32>
    %184 = vector.broadcast %15 : vector<1x32xf32> to vector<16x32xf32>
    %185 = arith.addf %183, %184 : vector<16x32xf32>
    %186 = vector.shape_cast %185 : vector<16x32xf32> to vector<2x8x32xf32>
    %c0_69 = arith.constant 0 : index
    %c0_70 = arith.constant 0 : index
    %c0_71 = arith.constant 0 : index
    %187 = vector.load %arg9[%c0_69, %c0_70, %c0_71] : memref<2x8x32xf32, #tpu.memory_space<vmem>>, vector<2x8x32xf32>
    tpu.vector_store %arg9[%c0_69, %c0_70, %c0_71], %186 {strides = array<i32>} : memref<2x8x32xf32, #tpu.memory_space<vmem>>, vector<2x8x32xf32>,
    return
  }
  func.func @transform_0(%arg0: i32, %arg1: i32) -> (i32, i32, i32) {
    %c0_i32 = arith.constant 0 : i32
    %c0_i32_0 = arith.constant 0 : i32
    %c0_i32_1 = arith.constant 0 : i32
    return %arg0, %c0_i32, %c0_i32_0 : i32, i32, i32
  }
  func.func @transform_1(%arg0: i32, %arg1: i32) -> (i32, i32, i32) {
    %c0_i32 = arith.constant 0 : i32
    %c0_i32_0 = arith.constant 0 : i32
    %c0_i32_1 = arith.constant 0 : i32
    return %arg0, %c0_i32, %c0_i32_0 : i32, i32, i32
  }
  func.func @transform_2(%arg0: i32, %arg1: i32) -> (i32, i32, i32) {
    %c0_i32 = arith.constant 0 : i32
    %c0_i32_0 = arith.constant 0 : i32
    %c0_i32_1 = arith.constant 0 : i32
    return %arg1, %c0_i32, %c0_i32_0 : i32, i32, i32
  }
  func.func @transform_3(%arg0: i32, %arg1: i32) -> (i32, i32, i32) {
    %c0_i32 = arith.constant 0 : i32
    %c0_i32_0 = arith.constant 0 : i32
    %c0_i32_1 = arith.constant 0 : i32
    return %arg1, %c0_i32, %c0_i32_0 : i32, i32, i32
  }
  func.func @transform_4(%arg0: i32, %arg1: i32) -> (i32, i32, i32) {
    %c0_i32 = arith.constant 0 : i32
    %c0_i32_0 = arith.constant 0 : i32
    %c0_i32_1 = arith.constant 0 : i32
    return %arg1, %c0_i32, %c0_i32_0 : i32, i32, i32
  }
  func.func @transform_5(%arg0: i32, %arg1: i32) -> (i32, i32, i32) {
    %c0_i32 = arith.constant 0 : i32
    %c0_i32_0 = arith.constant 0 : i32
    %c0_i32_1 = arith.constant 0 : i32
    return %arg1, %c0_i32, %c0_i32_0 : i32, i32, i32
  }
  func.func @transform_6(%arg0: i32, %arg1: i32) -> (i32, i32, i32) {
    %c0_i32 = arith.constant 0 : i32
    %c0_i32_0 = arith.constant 0 : i32
    %c0_i32_1 = arith.constant 0 : i32
    return %arg1, %c0_i32, %c0_i32_0 : i32, i32, i32
  }
  func.func @transform_7(%arg0: i32, %arg1: i32) -> (i32, i32, i32) {
    %c0_i32 = arith.constant 0 : i32
    %c0_i32_0 = arith.constant 0 : i32
    %c0_i32_1 = arith.constant 0 : i32
    return %arg0, %c0_i32, %c0_i32_0 : i32, i32, i32
  }
}

</mosaic_0001>

<llo_original>
// kernel: tpu_custom_call.1
$region0: #{tpu_custom_call.1}
  #allocation0 [shape = 'u32[]', space=smem, size = 0x4, offset = 0x4, fixed_abs, tag = 'smem constant byte address 0x4 - core index']
  #allocation1 [shape = 'u32[72,128]{1,0:T(1,128)}', space=vmem, size = 0x9000, scoped, tag = 'internal scratch']
  #allocation2 [shape = 'bf16[2,8,32]{2,1,0:T(8,128)(2,1)}', space=vmem, size = 0x1000, scoped, tag = 'scratch operand']
  %s0 = inlined_call_operand.hbm [shape: f32[2,8,32], index: 0, kind: input, shape index: {}]
  %s1 = inlined_call_operand.hbm [shape: f32[2,8,8], index: 1, kind: input, shape index: {}]
  %s2 = inlined_call_operand.vmem [shape: bf16[2,32,96], index: 2, kind: input, shape index: {}]
  %s3 = inlined_call_operand.vmem [shape: bf16[2,32,32], index: 3, kind: input, shape index: {}]
  %s4 = inlined_call_operand.vmem [shape: bf16[2,32,64], index: 4, kind: input, shape index: {}]
  %s5 = inlined_call_operand.vmem [shape: bf16[2,64,32], index: 5, kind: input, shape index: {}]
  %s6 = inlined_call_operand.hbm [shape: f32[2,8,96], index: 6, kind: input, shape index: {}]
  %s7 = inlined_call_operand.hbm [shape: f32[2,8,32], index: 7, kind: output, shape index: {}]
  %s8 = sld [smem:[#allocation0]]
  $region77: #{tpu_custom_call.1} parent=0
    _
  %s10 = ssub.s32 1, %s8
  %s11 = scalar_select 0, %s10, %s8
  $region1: #{tpu_custom_call.1} parent=0
    #allocation3 [shape = 'u8[8192]{0}', space=vmem, size = 0x2000, scoped, tag = 'input window, operand 0, single buffered']
    #allocation4 [shape = 's32[2]{0}', space=sflag, size = 0x8, scoped, tag = 'scoped memory for tpu_custom_call.1']
    #allocation5 [shape = 's32[2]{0}', space=sflag, size = 0x8, scoped, tag = 'scoped memory for tpu_custom_call.1']
    #allocation6 [shape = 'u8[8192]{0}', space=vmem, size = 0x2000, scoped, tag = 'input window, operand 1, single buffered']
    #allocation7 [shape = 's32[1]{0}', space=sflag, size = 0x4, scoped, tag = 'scoped memory for tpu_custom_call.1']
    #allocation8 [shape = 'u8[8192]{0}', space=vmem, size = 0x2000, scoped, tag = 'input window, operand 6']
    #allocation9 [shape = 'u8[8192]{0}', space=vmem, size = 0x2000, scoped, tag = 'output window, operand 0, single buffered']
    %12 = vsyncpa [#allocation4], 0
    %13 = vsyncpa [#allocation7], 0
    %14 = vsyncpa [#allocation5], 0
    loop: start=0, step=1, limit=4
    $region2: #{tpu_custom_call.1} parent=1 // loop_pre_header
      _
    $region3: #{tpu_custom_call.1} parent=1 // loop_header
      %s16 = sphi 0, %s20
      %p17 = scmp.ge.s32.totalorder %s16, 4
      %s23 = sphi 0, %s35
      %s24 = sphi 0, %s31
      %s25 = sphi 0, %s23
      %s26 = sphi 0, %s24
      %s27 = sphi 0, %s25
      %s28 = sphi 0, %s26
      %s38 = sphi 0, %s40
      %s41 = sphi 0, %s38
      %s42 = sphi 0, %s41
      %s58 = sphi 0, %s42
      %s64 = sphi 0, %s66
      %s67 = sphi 0, %s64
      %s68 = sphi 0, %s67
      %s84 = sphi 0, %s68
      %s90 = sphi 0, %s92
      %s93 = sphi 0, %s90
      %s94 = sphi 0, %s93
      %s110 = sphi 0, %s94
      %s116 = sphi 0, %s118
      %s119 = sphi 0, %s116
      %s120 = sphi 0, %s119
      %s136 = sphi 0, %s120
      %s142 = sphi 0, %s144
      %s145 = sphi 0, %s142
      %s146 = sphi 0, %s145
      %s162 = sphi 0, %s146
      %s168 = sphi 0, %s170
      %s171 = sphi 0, %s168
      %s172 = sphi 0, %s171
      %s188 = sphi 0, %s172
      %s194 = sphi 0, %s196
      %s197 = sphi 0, %s194
      %s198 = sphi 0, %s197
      %s214 = sphi 0, %s198
      %s220 = sphi 0, %s222
      %s223 = sphi 0, %s220
      %s224 = sphi 0, %s223
      %s240 = sphi 0, %s224
    $region4: #{tpu_custom_call.1} parent=1 // loop_header_branch
      %19 = sbr.rel (%p17) target = $region8
    $region5: #{tpu_custom_call.1} parent=1 // loop_body
      %s21 = ssub.s32 %s16, 1
      %s22 = ssub.s32 %s16, 2
      %s29 = sadd.s32 1, %s24
      %p30 = scmp.ge.s32.totalorder %s29, 2
      %s31 = scalar_select %p30, 0, %s29
      %s32 = sadd.s32 1, %s23
      %s33 = scalar_select %p30, %s32, %s23
      %p34 = scmp.ge.s32.totalorder %s33, 1
      %s35 = scalar_select %p34, 0, %s33
      %s36 = ssub.s32 %s23, %s35
      %p37 = scmp.eq.s32.totalorder %s36, 0
      %s39 = sadd.s32 %s38, 1
      %s40 = scalar_select %p37, %s38, %s39
      %p43 = pneg %p37
      %p44 = scmp.eq.s32.totalorder %s16, 1
      %p45 = por %p43, %p44
      %p46 = scmp.ne.s32.totalorder %s38, %s41
      %p47 = scmp.eq.s32.totalorder %s16, 0
      %p48 = por %p46, %p47
      %p49 = scmp.ne.s32.totalorder %s38, %s41
      %p50 = scmp.eq.s32.totalorder %s21, 1
      %p51 = por %p49, %p50
      %p52 = scmp.ne.s32.totalorder %s41, %s42
      %p53 = scmp.eq.s32.totalorder %s21, 0
      %p54 = por %p52, %p53
      %p55 = scmp.ne.s32.totalorder %s41, %s42
      %p56 = scmp.eq.s32.totalorder %s22, 1
      %p57 = por %p55, %p56
      %p59 = scmp.ne.s32.totalorder %s42, %s58
      %p60 = scmp.eq.s32.totalorder %s22, 0
      %p61 = por %p59, %p60
      %s62 = ssub.s32 %s23, %s35
      %p63 = scmp.eq.s32.totalorder %s62, 0
      %s65 = sadd.s32 %s64, 1
      %s66 = scalar_select %p63, %s64, %s65
      %p69 = pneg %p63
      %p70 = scmp.eq.s32.totalorder %s16, 1
      %p71 = por %p69, %p70
      %p72 = scmp.ne.s32.totalorder %s64, %s67
      %p73 = scmp.eq.s32.totalorder %s16, 0
      %p74 = por %p72, %p73
      %p75 = scmp.ne.s32.totalorder %s64, %s67
      %p76 = scmp.eq.s32.totalorder %s21, 1
      %p77 = por %p75, %p76
      %p78 = scmp.ne.s32.totalorder %s67, %s68
      %p79 = scmp.eq.s32.totalorder %s21, 0
      %p80 = por %p78, %p79
      %p81 = scmp.ne.s32.totalorder %s67, %s68
      %p82 = scmp.eq.s32.totalorder %s22, 1
      %p83 = por %p81, %p82
      %p85 = scmp.ne.s32.totalorder %s68, %s84
      %p86 = scmp.eq.s32.totalorder %s22, 0
      %p87 = por %p85, %p86
      %s88 = ssub.s32 %s24, %s31
      %p89 = scmp.eq.s32.totalorder %s88, 0
      %s91 = sadd.s32 %s90, 1
      %s92 = scalar_select %p89, %s90, %s91
      %p95 = pneg %p89
      %p96 = scmp.eq.s32.totalorder %s16, 1
      %p97 = por %p95, %p96
      %p98 = scmp.ne.s32.totalorder %s90, %s93
      %p99 = scmp.eq.s32.totalorder %s16, 0
      %p100 = por %p98, %p99
      %p101 = scmp.ne.s32.totalorder %s90, %s93
      %p102 = scmp.eq.s32.totalorder %s21, 1
      %p103 = por %p101, %p102
      %p104 = scmp.ne.s32.totalorder %s93, %s94
      %p105 = scmp.eq.s32.totalorder %s21, 0
      %p106 = por %p104, %p105
      %p107 = scmp.ne.s32.totalorder %s93, %s94
      %p108 = scmp.eq.s32.totalorder %s22, 1
      %p109 = por %p107, %p108
      %p111 = scmp.ne.s32.totalorder %s94, %s110
      %p112 = scmp.eq.s32.totalorder %s22, 0
      %p113 = por %p111, %p112
      %s114 = ssub.s32 %s24, %s31
      %p115 = scmp.eq.s32.totalorder %s114, 0
      %s117 = sadd.s32 %s116, 1
      %s118 = scalar_select %p115, %s116, %s117
      %p121 = pneg %p115
      %p122 = scmp.eq.s32.totalorder %s16, 1
      %p123 = por %p121, %p122
      %p124 = scmp.ne.s32.totalorder %s116, %s119
      %p125 = scmp.eq.s32.totalorder %s16, 0
      %p126 = por %p124, %p125
      %p127 = scmp.ne.s32.totalorder %s116, %s119
      %p128 = scmp.eq.s32.totalorder %s21, 1
      %p129 = por %p127, %p128
      %p130 = scmp.ne.s32.totalorder %s119, %s120
      %p131 = scmp.eq.s32.totalorder %s21, 0
      %p132 = por %p130, %p131
      %p133 = scmp.ne.s32.totalorder %s119, %s120
      %p134 = scmp.eq.s32.totalorder %s22, 1
      %p135 = por %p133, %p134
      %p137 = scmp.ne.s32.totalorder %s120, %s136
      %p138 = scmp.eq.s32.totalorder %s22, 0
      %p139 = por %p137, %p138
      %s140 = ssub.s32 %s24, %s31
      %p141 = scmp.eq.s32.totalorder %s140, 0
      %s143 = sadd.s32 %s142, 1
      %s144 = scalar_select %p141, %s142, %s143
      %p147 = pneg %p141
      %p148 = scmp.eq.s32.totalorder %s16, 1
      %p149 = por %p147, %p148
      %p150 = scmp.ne.s32.totalorder %s142, %s145
      %p151 = scmp.eq.s32.totalorder %s16, 0
      %p152 = por %p150, %p151
      %p153 = scmp.ne.s32.totalorder %s142, %s145
      %p154 = scmp.eq.s32.totalorder %s21, 1
      %p155 = por %p153, %p154
      %p156 = scmp.ne.s32.totalorder %s145, %s146
      %p157 = scmp.eq.s32.totalorder %s21, 0
      %p158 = por %p156, %p157
      %p159 = scmp.ne.s32.totalorder %s145, %s146
      %p160 = scmp.eq.s32.totalorder %s22, 1
      %p161 = por %p159, %p160
      %p163 = scmp.ne.s32.totalorder %s146, %s162
      %p164 = scmp.eq.s32.totalorder %s22, 0
      %p165 = por %p163, %p164
      %s166 = ssub.s32 %s24, %s31
      %p167 = scmp.eq.s32.totalorder %s166, 0
      %s169 = sadd.s32 %s168, 1
      %s170 = scalar_select %p167, %s168, %s169
      %p173 = pneg %p167
      %p174 = scmp.eq.s32.totalorder %s16, 1
      %p175 = por %p173, %p174
      %p176 = scmp.ne.s32.totalorder %s168, %s171
      %p177 = scmp.eq.s32.totalorder %s16, 0
      %p178 = por %p176, %p177
      %p179 = scmp.ne.s32.totalorder %s168, %s171
      %p180 = scmp.eq.s32.totalorder %s21, 1
      %p181 = por %p179, %p180
      %p182 = scmp.ne.s32.totalorder %s171, %s172
      %p183 = scmp.eq.s32.totalorder %s21, 0
      %p184 = por %p182, %p183
      %p185 = scmp.ne.s32.totalorder %s171, %s172
      %p186 = scmp.eq.s32.totalorder %s22, 1
      %p187 = por %p185, %p186
      %p189 = scmp.ne.s32.totalorder %s172, %s188
      %p190 = scmp.eq.s32.totalorder %s22, 0
      %p191 = por %p189, %p190
      %s192 = ssub.s32 %s24, %s31
      %p193 = scmp.eq.s32.totalorder %s192, 0
      %s195 = sadd.s32 %s194, 1
      %s196 = scalar_select %p193, %s194, %s195
      %p199 = pneg %p193
      %p200 = scmp.eq.s32.totalorder %s16, 1
      %p201 = por %p199, %p200
      %p202 = scmp.ne.s32.totalorder %s194, %s197
      %p203 = scmp.eq.s32.totalorder %s16, 0
      %p204 = por %p202, %p203
      %p205 = scmp.ne.s32.totalorder %s194, %s197
      %p206 = scmp.eq.s32.totalorder %s21, 1
      %p207 = por %p205, %p206
      %p208 = scmp.ne.s32.totalorder %s197, %s198
      %p209 = scmp.eq.s32.totalorder %s21, 0
      %p210 = por %p208, %p209
      %p211 = scmp.ne.s32.totalorder %s197, %s198
      %p212 = scmp.eq.s32.totalorder %s22, 1
      %p213 = por %p211, %p212
      %p215 = scmp.ne.s32.totalorder %s198, %s214
      %p216 = scmp.eq.s32.totalorder %s22, 0
      %p217 = por %p215, %p216
      %s218 = ssub.s32 %s23, %s35
      %p219 = scmp.eq.s32.totalorder %s218, 0
      %s221 = sadd.s32 %s220, 1
      %s222 = scalar_select %p219, %s220, %s221
      %p225 = pneg %p219
      %p226 = scmp.eq.s32.totalorder %s16, 1
      %p227 = por %p225, %p226
      %p228 = scmp.ne.s32.totalorder %s220, %s223
      %p229 = scmp.eq.s32.totalorder %s16, 0
      %p230 = por %p228, %p229
      %p231 = scmp.ne.s32.totalorder %s220, %s223
      %p232 = scmp.eq.s32.totalorder %s21, 1
      %p233 = por %p231, %p232
      %p234 = scmp.ne.s32.totalorder %s223, %s224
      %p235 = scmp.eq.s32.totalorder %s21, 0
      %p236 = por %p234, %p235
      %p237 = scmp.ne.s32.totalorder %s223, %s224
      %p238 = scmp.eq.s32.totalorder %s22, 1
      %p239 = por %p237, %p238
      %p241 = scmp.ne.s32.totalorder %s224, %s240
      %p242 = scmp.eq.s32.totalorder %s22, 0
      %p243 = por %p241, %p242
      %p244 = scmp.le.s32.totalorder 1, %s16
      %p245 = scmp.lt.s32.totalorder %s16, 3
      %p246 = pnand %p244, %p245
      %p247 = pneg %p246
      // Predicated region
      $region9: #{tpu_custom_call.1} parent=5 // pred_check
        _
      $region10: #{tpu_custom_call.1} parent=5 // pred_check_branch
        %249 = sbr.rel (%p246) target = $region12
      $region11: #{tpu_custom_call.1} parent=5 // pred_region
        %s250 = ssub.s32 %s16, 1
        // Predicated region
        $region13: #{tpu_custom_call.1} parent=11 // pred_check
          %p251 = pneg %p54
        $region14: #{tpu_custom_call.1} parent=11 // pred_check_branch
          %253 = sbr.rel (%p251) target = $region16
        $region15: #{tpu_custom_call.1} parent=11 // pred_region
          %s254 = smul.u32 2, %s25
          %256 = vsyncadd [#allocation4], 0
          %s257 = smul.addr %s254, 8
          %s258 = scalar_lea.hbm %s0, %s257
          %s259 = sshll.u32 %s258, 4
          %s260 = int_to_ptr.hbm [resolvable:$true] %s259
          %s261 = sshll.u32 [#allocation3], 4
          %s262 = int_to_ptr.vmem [resolvable:$true] %s261
          %267 = dma.hbm_to_vmem [thread:$0]  %s260, 256, %s262, [#allocation4], 128, 128, 8
        $region16: #{tpu_custom_call.1} parent=11 // pred_fallthru
          _
        // Predicated region
        $region17: #{tpu_custom_call.1} parent=11 // pred_check
          %p268 = pneg %p80
        $region18: #{tpu_custom_call.1} parent=11 // pred_check_branch
          %270 = sbr.rel (%p268) target = $region20
        $region19: #{tpu_custom_call.1} parent=11 // pred_region
          %s271 = smul.u32 2, %s25
          %273 = vsyncadd [#allocation7], 0
          %s274 = smul.addr %s271, 8
          %s275 = scalar_lea.hbm %s1, %s274
          %s276 = sshll.u32 %s275, 4
          %s277 = int_to_ptr.hbm [resolvable:$true] %s276
          %s278 = sshll.u32 [#allocation6], 4
          %s279 = int_to_ptr.vmem [resolvable:$true] %s278
          %284 = dma.hbm_to_vmem [thread:$0]  %s277, 256, %s279, [#allocation7], 128, 128, 8
        $region20: #{tpu_custom_call.1} parent=11 // pred_fallthru
          _
      $region12: #{tpu_custom_call.1} parent=5 // pred_fallthru
        _
      %p285 = scmp.lt.s32.totalorder %s16, 2
      // Predicated region
      $region21: #{tpu_custom_call.1} parent=5 // pred_check
        %p286 = pneg %p285
      $region22: #{tpu_custom_call.1} parent=5 // pred_check_branch
        %288 = sbr.rel (%p286) target = $region24
      $region23: #{tpu_custom_call.1} parent=5 // pred_region
        // Predicated region
        $region25: #{tpu_custom_call.1} parent=23 // pred_check
          %p289 = pneg %p100
        $region26: #{tpu_custom_call.1} parent=23 // pred_check_branch
          %291 = sbr.rel (%p289) target = $region28
        $region27: #{tpu_custom_call.1} parent=23 // pred_region
          %p292 = scmp.lt.s32.totalorder %s24, 1
          %s293 = scalar_select %p292, %s24, 1
          %s294 = smul.addr %s293, 4
          %s295 = smul.addr %s294, 4
          %s296 = scalar_lea.vmem %s2, %s295
        $region28: #{tpu_custom_call.1} parent=23 // pred_fallthru
          _
        // Predicated region
        $region29: #{tpu_custom_call.1} parent=23 // pred_check
          %p297 = pneg %p126
        $region30: #{tpu_custom_call.1} parent=23 // pred_check_branch
          %299 = sbr.rel (%p297) target = $region32
        $region31: #{tpu_custom_call.1} parent=23 // pred_region
          %p300 = scmp.lt.s32.totalorder %s24, 1
          %s301 = scalar_select %p300, %s24, 1
          %s302 = smul.addr %s301, 4
          %s303 = smul.addr %s302, 4
          %s304 = scalar_lea.vmem %s3, %s303
        $region32: #{tpu_custom_call.1} parent=23 // pred_fallthru
          _
        // Predicated region
        $region33: #{tpu_custom_call.1} parent=23 // pred_check
          %p305 = pneg %p152
        $region34: #{tpu_custom_call.1} parent=23 // pred_check_branch
          %307 = sbr.rel (%p305) target = $region36
        $region35: #{tpu_custom_call.1} parent=23 // pred_region
          %p308 = scmp.lt.s32.totalorder %s24, 1
          %s309 = scalar_select %p308, %s24, 1
          %s310 = smul.addr %s309, 4
          %s311 = smul.addr %s310, 4
          %s312 = scalar_lea.vmem %s4, %s311
        $region36: #{tpu_custom_call.1} parent=23 // pred_fallthru
          _
        // Predicated region
        $region37: #{tpu_custom_call.1} parent=23 // pred_check
          %p313 = pneg %p178
        $region38: #{tpu_custom_call.1} parent=23 // pred_check_branch
          %315 = sbr.rel (%p313) target = $region40
        $region39: #{tpu_custom_call.1} parent=23 // pred_region
          %p316 = scmp.lt.s32.totalorder %s24, 1
          %s317 = scalar_select %p316, %s24, 1
          %s318 = smul.addr %s317, 8
          %s319 = smul.addr %s318, 4
          %s320 = scalar_lea.vmem %s5, %s319
        $region40: #{tpu_custom_call.1} parent=23 // pred_fallthru
          _
        // Predicated region
        $region41: #{tpu_custom_call.1} parent=23 // pred_check
          %p321 = pneg %p204
        $region42: #{tpu_custom_call.1} parent=23 // pred_check_branch
          %323 = sbr.rel (%p321) target = $region44
        $region43: #{tpu_custom_call.1} parent=23 // pred_region
          %s324 = sand.u32 %s16, 1
          %s325 = scalar_lea.sflag [#allocation4], %s324
          %s326 = sand.u32 %s194, 1
          %s327 = smul.addr %s326, 8
          %s328 = scalar_lea.vmem [#allocation8], %s327
          %330 = vsyncadd %s325, 0
          %s331 = smul.addr %s24, 8
          %s332 = scalar_lea.hbm %s6, %s331
          %s334 = sshll.u32 %s332, 4
          %s335 = int_to_ptr.hbm [resolvable:$true] %s334
          %s336 = sshll.u32 %s328, 4
          %s337 = int_to_ptr.vmem [resolvable:$true] %s336
          %339 = dma.hbm_to_vmem [thread:$0]  %s335, 128, %s337, %s325
        $region44: #{tpu_custom_call.1} parent=23 // pred_fallthru
          _
      $region24: #{tpu_custom_call.1} parent=5 // pred_fallthru
        _
      %p340 = scmp.le.s32.totalorder 1, %s16
      %p341 = scmp.lt.s32.totalorder %s16, 3
      %p342 = pnand %p340, %p341
      %p343 = pneg %p342
      // Predicated region
      $region45: #{tpu_custom_call.1} parent=5 // pred_check
        _
      $region46: #{tpu_custom_call.1} parent=5 // pred_check_branch
        %345 = sbr.rel (%p342) target = $region48
      $region47: #{tpu_custom_call.1} parent=5 // pred_region
        %s346 = ssub.s32 %s16, 1
        // Predicated region
        $region49: #{tpu_custom_call.1} parent=47 // pred_check
          %p347 = pneg %p54
        $region50: #{tpu_custom_call.1} parent=47 // pred_check_branch
          %349 = sbr.rel (%p347) target = $region52
        $region51: #{tpu_custom_call.1} parent=47 // pred_region
          %351 = dma.done [#allocation4], 256
        $region52: #{tpu_custom_call.1} parent=47 // pred_fallthru
          _
        // Predicated region
        $region53: #{tpu_custom_call.1} parent=47 // pred_check
          %p352 = pneg %p80
        $region54: #{tpu_custom_call.1} parent=47 // pred_check_branch
          %354 = sbr.rel (%p352) target = $region56
        $region55: #{tpu_custom_call.1} parent=47 // pred_region
          %356 = dma.done [#allocation7], 256
        $region56: #{tpu_custom_call.1} parent=47 // pred_fallthru
          _
        %s357 = sand.u32 %s21, 1
        %s358 = scalar_lea.sflag [#allocation4], %s357
        %s359 = sand.u32 %s197, 1
        %s360 = smul.addr %s359, 8
        %s361 = scalar_lea.vmem [#allocation8], %s360
        // Predicated region
        $region57: #{tpu_custom_call.1} parent=47 // pred_check
          %p362 = pneg %p210
        $region58: #{tpu_custom_call.1} parent=47 // pred_check_branch
          %364 = sbr.rel (%p362) target = $region60
        $region59: #{tpu_custom_call.1} parent=47 // pred_region
          %366 = dma.done %s358, 128
        $region60: #{tpu_custom_call.1} parent=47 // pred_fallthru
          _
        %p367 = pneg %p54
        %p368 = pneg %p51
        %p369 = pneg %p80
        %p370 = pneg %p77
        %p371 = scmp.lt.s32.totalorder %s26, 1
        %s372 = scalar_select %p371, %s26, 1
        %s373 = smul.addr %s372, 4
        %s374 = smul.addr %s373, 4
        %s375 = scalar_lea.vmem %s2, %s374
        %p376 = pneg %p106
        %p377 = pneg %p103
        %p378 = scmp.lt.s32.totalorder %s26, 1
        %s379 = scalar_select %p378, %s26, 1
        %s380 = smul.addr %s379, 4
        %s381 = smul.addr %s380, 4
        %s382 = scalar_lea.vmem %s3, %s381
        %p383 = pneg %p132
        %p384 = pneg %p129
        %p385 = scmp.lt.s32.totalorder %s26, 1
        %s386 = scalar_select %p385, %s26, 1
        %s387 = smul.addr %s386, 4
        %s388 = smul.addr %s387, 4
        %s389 = scalar_lea.vmem %s4, %s388
        %p390 = pneg %p158
        %p391 = pneg %p155
        %p392 = scmp.lt.s32.totalorder %s26, 1
        %s393 = scalar_select %p392, %s26, 1
        %s394 = smul.addr %s393, 8
        %s395 = smul.addr %s394, 4
        %s396 = scalar_lea.vmem %s5, %s395
        %p397 = pneg %p184
        %p398 = pneg %p181
        %s399 = sand.u32 %s21, 1
        %s400 = scalar_lea.sflag [#allocation4], %s399
        %s401 = sand.u32 %s197, 1
        %s402 = smul.addr %s401, 8
        %s403 = scalar_lea.vmem [#allocation8], %s402
        %p404 = pneg %p210
        %p405 = pneg %p207
        %p406 = pneg %p236
        %p407 = pneg %p233
        %s408 = smul.u32 2, %s25
        %s409 = smul.u32 2, %s25
        %p410 = scmp.lt.s32.totalorder %s26, 1
        %s411 = scalar_select %p410, %s26, 1
        %s412 = smul.addr %s411, 4
        %s413 = smul.addr %s412, 4
        %s414 = scalar_lea.vmem %s2, %s413
        %p415 = scmp.lt.s32.totalorder %s26, 1
        %s416 = scalar_select %p415, %s26, 1
        %s417 = smul.addr %s416, 4
        %s418 = smul.addr %s417, 4
        %s419 = scalar_lea.vmem %s3, %s418
        %p420 = scmp.lt.s32.totalorder %s26, 1
        %s421 = scalar_select %p420, %s26, 1
        %s422 = smul.addr %s421, 4
        %s423 = smul.addr %s422, 4
        %s424 = scalar_lea.vmem %s4, %s423
        %p425 = scmp.lt.s32.totalorder %s26, 1
        %s426 = scalar_select %p425, %s26, 1
        %s427 = smul.addr %s426, 8
        %s428 = smul.addr %s427, 4
        %s429 = scalar_lea.vmem %s5, %s428
        %s430 = smul.u32 2, %s25
        %p432 = scmp.eq.s32.totalorder %s26, 0
        // Predicated region
        $region61: #{tpu_custom_call.1} parent=47 // pred_check
          %p433 = pneg %p432
        $region62: #{tpu_custom_call.1} parent=47 // pred_check_branch
          %435 = sbr.rel (%p433) target = $region64
        $region63: #{tpu_custom_call.1} parent=47 // pred_region
          %v436 = vld [vmem:[#allocation3] sm:$0xff]
          %v437 = vld [vmem:[#allocation3 + $0x8] sm:$0xff]
          %vm438 = vcmask 261120
          %439 = vst.msk [vmem:[#allocation9] sm:$0xff] %vm438, %v436
          %440 = vst.msk [vmem:[#allocation9 + $0x8] sm:$0xff] %vm438, %v437
        $region64: #{tpu_custom_call.1} parent=47 // pred_fallthru
          _
        %v441 = vld [vmem:[#allocation9] sm:$0xff]
        %v442 = vld [vmem:[#allocation9 + $0x8] sm:$0xff]
        %v443 = vld [vmem:[#allocation6] sm:$0xff]
        %v444 = vld [vmem:[#allocation6 + $0x8] sm:$0xff]
        %v445 = vld [vmem:[%s361] sm:$0xff]
        %v446 = vpack.c.bf16 %v442, %v441
        %v447 = vld [vmem:[%s414] sm:$0xf]
        %v448 = vld [vmem:[%s414 + $0x4] sm:$0xf]
        %v449 = vld [vmem:[%s414 + $0x8] sm:$0xf]
        %v450 = vld [vmem:[%s414 + $0xc] sm:$0xf]
        %v451 = vperm.slane %v445, 0
        %v456 = vunpack.c.l.b16 %v447
        %v457 = vunpack.c.l.b16 %v448
        %v458 = vunpack.c.l.b16 %v449
        %v459 = vunpack.c.l.b16 %v450
        %v460 = vpack.c.b16 %v457, %v456
        %v461 = vpack.c.b16 %v459, %v458
        %vm464 = vcmask 261120
        %v466 = vsel %vm464, %v446, 0
        %468 = vmatpush.bf16.msra.mxu0 0
        %469 = vmatpush.bf16.msra.mxu0 0
        %470 = vmatpush.bf16.msra.mxu0 0
        %471 = vmatpush.bf16.msra.mxu0 0
        %472 = vmatpush.bf16.msra.mxu0 0
        %473 = vmatpush.bf16.msra.mxu0 0
        %474 = vmatpush.bf16.msra.mxu0 %v461
        %475 = vmatpush.bf16.msra.mxu0 %v460
        %476 = vmatmul.bf16.gmra.mxu0 %v466
        %v477 = vpop.f32.mrf.mxu0
        %v478 = vadd.f32 %v451, %v477
        %v479 = vpop.f32.mrf.mxu0
        %v480 = vadd.f32 %v451, %v479
        %481 = vdwg.mxu0
        %v482 = vpack.c.bf16 %v478, %v478
        %v483 = vpack.c.bf16 %v480, %v480
        %v485 = vunpack.c.l.b16 %v482
        %v486 = vpack.c.b16 %v485, %v485
        %487 = vrot.lane.b32.xlu0 %v486, 96
        %v488 = vpop.permute.xlu0 %487
        %vm489 = vcmask 64512
        %v491 = vsel %vm489, %v482, 0
        %v494 = vsel %vm489, %v488, 0
        %496 = vmatpush.bf16.xpose.msra.mxu0 0
        %497 = vmatpush.bf16.xpose.msra.mxu0 0
        %498 = vmatpush.bf16.xpose.msra.mxu0 0
        %499 = vmatpush.bf16.xpose.msra.mxu0 0
        %500 = vmatpush.bf16.xpose.msra.mxu0 0
        %501 = vmatpush.bf16.xpose.msra.mxu0 0
        %502 = vmatpush.bf16.xpose.msra.mxu0 0
        %503 = vmatpush.bf16.xpose.msra.mxu0 %v494
        %504 = vmatmul.bf16.gmra.mxu0 %v491
        %v505 = vpop.f32.mrf.mxu0
        %v506 = vadd.f32 %v443, %v505
        %v507 = vpop.f32.mrf.mxu0
        %508 = vdwg.mxu0
        %v510 = vunpack.c.l.b16 %v483
        %v511 = vpack.c.b16 %v510, %v510
        %512 = vrot.lane.b32.xlu0 %v511, 96
        %v513 = vpop.permute.xlu0 %512
        %v515 = vsel %vm489, %v483, 0
        %v518 = vsel %vm489, %v513, 0
        %520 = vmatpush.bf16.xpose.msra.mxu0 0
        %521 = vmatpush.bf16.xpose.msra.mxu0 0
        %522 = vmatpush.bf16.xpose.msra.mxu0 0
        %523 = vmatpush.bf16.xpose.msra.mxu0 0
        %524 = vmatpush.bf16.xpose.msra.mxu0 0
        %525 = vmatpush.bf16.xpose.msra.mxu0 0
        %526 = vmatpush.bf16.xpose.msra.mxu0 0
        %527 = vmatpush.bf16.xpose.msra.mxu0 %v518
        %528 = vmatmul.bf16.gmra.mxu0 %v515
        %v529 = vpop.f32.mrf.mxu0
        %v530 = vadd.f32 %v444, %v529
        %v531 = vpop.f32.mrf.mxu0
        %532 = vdwg.mxu0
        %v533 = vsel %vm489, %v506, -inf
        %534 = vmax.xlane.f32.xlu0 %v533
        %v535 = vpop.xlane.xlu0 %534
        %v536 = vsel %vm489, %v530, -inf
        %537 = vmax.xlane.f32.xlu0 %v536
        %v538 = vpop.xlane.xlu0 %537
        %v539 = vsub.f32 %v506, %v535
        %v540 = vsub.f32 %v530, %v538
        %v541 = vmul.f32 %v539, 1.442695
        %v542 = vpow.pop %v541
        %v543 = vmul.f32 %v540, 1.442695
        %v544 = vpow.pop %v543
        %v545 = vsel %vm489, %v542, 0.0
        %546 = vadd.xlane.f32.xlu0 %v545
        %v547 = vpop.xlane.xlu0 %546
        %v548 = vsel %vm489, %v544, 0.0
        %549 = vadd.xlane.f32.xlu0 %v548
        %v550 = vpop.xlane.xlu0 %549
        %v551 = vadd.f32 %v547, 1e-30
        %v552 = vadd.f32 %v550, 1e-30
        %v553 = vrcp.pop %v551
        %v554 = vrcp.pop %v552
        %v555 = vmul.f32 %v542, %v553
        %v556 = vmul.f32 %v544, %v554
        %v557 = vpack.c.bf16 %v555, %v555
        %v558 = vpack.c.bf16 %v556, %v556
        %559 = vrot.lane.b32.xlu0 %v486, 64
        %v560 = vpop.permute.xlu0 %559
        %v562 = vsel %vm489, %v557, 0
        %vm564 = vcmask 1043456
        %v566 = vsel %vm564, %v560, 0
        %568 = vmatpush.bf16.msra.mxu0 0
        %569 = vmatpush.bf16.msra.mxu0 0
        %570 = vmatpush.bf16.msra.mxu0 0
        %571 = vmatpush.bf16.msra.mxu0 0
        %572 = vmatpush.bf16.msra.mxu0 0
        %573 = vmatpush.bf16.msra.mxu0 0
        %574 = vmatpush.bf16.msra.mxu0 0
        %575 = vmatpush.bf16.msra.mxu0 %v566
        %576 = vmatmul.bf16.gmra.mxu0 %v562
        %v577 = vpop.f32.mrf.mxu0
        %v578 = vadd.f32 0.0, %v577
        %v579 = vpop.f32.mrf.mxu0
        %580 = vdwg.mxu0
        %581 = vrot.lane.b32.xlu0 %v511, 64
        %v582 = vpop.permute.xlu0 %581
        %v584 = vsel %vm489, %v558, 0
        %v587 = vsel %vm564, %v582, 0
        %589 = vmatpush.bf16.msra.mxu0 0
        %590 = vmatpush.bf16.msra.mxu0 0
        %591 = vmatpush.bf16.msra.mxu0 0
        %592 = vmatpush.bf16.msra.mxu0 0
        %593 = vmatpush.bf16.msra.mxu0 0
        %594 = vmatpush.bf16.msra.mxu0 0
        %595 = vmatpush.bf16.msra.mxu0 0
        %596 = vmatpush.bf16.msra.mxu0 %v587
        %597 = vmatmul.bf16.gmra.mxu0 %v584
        %v598 = vpop.f32.mrf.mxu0
        %v599 = vadd.f32 0.0, %v598
        %v600 = vpop.f32.mrf.mxu0
        %601 = vdwg.mxu0
        %v602 = vpack.c.bf16 %v578, %v578
        %v603 = vpack.c.bf16 %v599, %v599
        %vm604 = vcmask 60416
        %605 = vst.msk [vmem:[#allocation2] sm:$0xf] %vm604, %v602
        %606 = vst.msk [vmem:[#allocation2 + $0x4] sm:$0xf] %vm604, %v603
        %607 = vrot.lane.b32.xlu0 %v486, 120
        %v608 = vpop.permute.xlu0 %607
        %609 = vrot.lane.b32.xlu0 %v486, 88
        %v610 = vpop.permute.xlu0 %609
        %v612 = vsel %vm489, %v608, 0
        %v615 = vsel %vm489, %v610, 0
        %617 = vmatpush.bf16.xpose.msra.mxu0 0
        %618 = vmatpush.bf16.xpose.msra.mxu0 0
        %619 = vmatpush.bf16.xpose.msra.mxu0 0
        %620 = vmatpush.bf16.xpose.msra.mxu0 0
        %621 = vmatpush.bf16.xpose.msra.mxu0 0
        %622 = vmatpush.bf16.xpose.msra.mxu0 0
        %623 = vmatpush.bf16.xpose.msra.mxu0 0
        %624 = vmatpush.bf16.xpose.msra.mxu0 %v615
        %625 = vmatmul.bf16.gmra.mxu0 %v612
        %v626 = vpop.f32.mrf.mxu0
        %v627 = vadd.f32 %v443, %v626
        %v628 = vpop.f32.mrf.mxu0
        %629 = vdwg.mxu0
        %630 = vrot.lane.b32.xlu0 %v511, 120
        %v631 = vpop.permute.xlu0 %630
        %632 = vrot.lane.b32.xlu0 %v511, 88
        %v633 = vpop.permute.xlu0 %632
        %v635 = vsel %vm489, %v631, 0
        %v638 = vsel %vm489, %v633, 0
        %640 = vmatpush.bf16.xpose.msra.mxu0 0
        %641 = vmatpush.bf16.xpose.msra.mxu0 0
        %642 = vmatpush.bf16.xpose.msra.mxu0 0
        %643 = vmatpush.bf16.xpose.msra.mxu0 0
        %644 = vmatpush.bf16.xpose.msra.mxu0 0
        %645 = vmatpush.bf16.xpose.msra.mxu0 0
        %646 = vmatpush.bf16.xpose.msra.mxu0 0
        %647 = vmatpush.bf16.xpose.msra.mxu0 %v638
        %648 = vmatmul.bf16.gmra.mxu0 %v635
        %v649 = vpop.f32.mrf.mxu0
        %v650 = vadd.f32 %v444, %v649
        %v651 = vpop.f32.mrf.mxu0
        %652 = vdwg.mxu0
        %v653 = vsel %vm489, %v627, -inf
        %654 = vmax.xlane.f32.xlu0 %v653
        %v655 = vpop.xlane.xlu0 %654
        %v656 = vsel %vm489, %v650, -inf
        %657 = vmax.xlane.f32.xlu0 %v656
        %v658 = vpop.xlane.xlu0 %657
        %v659 = vsub.f32 %v627, %v655
        %v660 = vsub.f32 %v650, %v658
        %v661 = vmul.f32 %v659, 1.442695
        %v662 = vpow.pop %v661
        %v663 = vmul.f32 %v660, 1.442695
        %v664 = vpow.pop %v663
        %v665 = vsel %vm489, %v662, 0.0
        %666 = vadd.xlane.f32.xlu0 %v665
        %v667 = vpop.xlane.xlu0 %666
        %v668 = vsel %vm489, %v664, 0.0
        %669 = vadd.xlane.f32.xlu0 %v668
        %v670 = vpop.xlane.xlu0 %669
        %v671 = vadd.f32 %v667, 1e-30
        %v672 = vadd.f32 %v670, 1e-30
        %v673 = vrcp.pop %v671
        %v674 = vrcp.pop %v672
        %v675 = vmul.f32 %v662, %v673
        %v676 = vmul.f32 %v664, %v674
        %v677 = vpack.c.bf16 %v675, %v675
        %v678 = vpack.c.bf16 %v676, %v676
        %679 = vrot.lane.b32.xlu0 %v486, 56
        %v680 = vpop.permute.xlu0 %679
        %v682 = vsel %vm489, %v677, 0
        %v685 = vsel %vm564, %v680, 0
        %687 = vmatpush.bf16.msra.mxu0 0
        %688 = vmatpush.bf16.msra.mxu0 0
        %689 = vmatpush.bf16.msra.mxu0 0
        %690 = vmatpush.bf16.msra.mxu0 0
        %691 = vmatpush.bf16.msra.mxu0 0
        %692 = vmatpush.bf16.msra.mxu0 0
        %693 = vmatpush.bf16.msra.mxu0 0
        %694 = vmatpush.bf16.msra.mxu0 %v685
        %695 = vmatmul.bf16.gmra.mxu0 %v682
        %v696 = vpop.f32.mrf.mxu0
        %v697 = vadd.f32 0.0, %v696
        %v698 = vpop.f32.mrf.mxu0
        %699 = vdwg.mxu0
        %700 = vrot.lane.b32.xlu0 %v511, 56
        %v701 = vpop.permute.xlu0 %700
        %v703 = vsel %vm489, %v678, 0
        %v706 = vsel %vm564, %v701, 0
        %708 = vmatpush.bf16.msra.mxu0 0
        %709 = vmatpush.bf16.msra.mxu0 0
        %710 = vmatpush.bf16.msra.mxu0 0
        %711 = vmatpush.bf16.msra.mxu0 0
        %712 = vmatpush.bf16.msra.mxu0 0
        %713 = vmatpush.bf16.msra.mxu0 0
        %714 = vmatpush.bf16.msra.mxu0 0
        %715 = vmatpush.bf16.msra.mxu0 %v706
        %716 = vmatmul.bf16.gmra.mxu0 %v703
        %v717 = vpop.f32.mrf.mxu0
        %v718 = vadd.f32 0.0, %v717
        %v719 = vpop.f32.mrf.mxu0
        %720 = vdwg.mxu0
        %v721 = vpack.c.bf16 %v697, %v697
        %v722 = vpack.c.bf16 %v718, %v718
        %725 = vrot.lane.b32.xlu0 %v721, 8
        %v726 = vpop.permute.xlu0 %725
        %727 = vrot.lane.b32.xlu0 %v722, 8
        %v728 = vpop.permute.xlu0 %727
        %vm731 = vcmask 126016
        %732 = vst.msk [vmem:[#allocation2] sm:$0xf] %vm731, %v726
        %733 = vst.msk [vmem:[#allocation2 + $0x4] sm:$0xf] %vm731, %v728
        %734 = vrot.lane.b32.xlu0 %v486, 112
        %v735 = vpop.permute.xlu0 %734
        %736 = vrot.lane.b32.xlu0 %v486, 80
        %v737 = vpop.permute.xlu0 %736
        %v739 = vsel %vm489, %v735, 0
        %v742 = vsel %vm489, %v737, 0
        %744 = vmatpush.bf16.xpose.msra.mxu0 0
        %745 = vmatpush.bf16.xpose.msra.mxu0 0
        %746 = vmatpush.bf16.xpose.msra.mxu0 0
        %747 = vmatpush.bf16.xpose.msra.mxu0 0
        %748 = vmatpush.bf16.xpose.msra.mxu0 0
        %749 = vmatpush.bf16.xpose.msra.mxu0 0
        %750 = vmatpush.bf16.xpose.msra.mxu0 0
        %751 = vmatpush.bf16.xpose.msra.mxu0 %v742
        %752 = vmatmul.bf16.gmra.mxu0 %v739
        %v753 = vpop.f32.mrf.mxu0
        %v754 = vadd.f32 %v443, %v753
        %v755 = vpop.f32.mrf.mxu0
        %756 = vdwg.mxu0
        %757 = vrot.lane.b32.xlu0 %v511, 112
        %v758 = vpop.permute.xlu0 %757
        %759 = vrot.lane.b32.xlu0 %v511, 80
        %v760 = vpop.permute.xlu0 %759
        %v762 = vsel %vm489, %v758, 0
        %v765 = vsel %vm489, %v760, 0
        %767 = vmatpush.bf16.xpose.msra.mxu0 0
        %768 = vmatpush.bf16.xpose.msra.mxu0 0
        %769 = vmatpush.bf16.xpose.msra.mxu0 0
        %770 = vmatpush.bf16.xpose.msra.mxu0 0
        %771 = vmatpush.bf16.xpose.msra.mxu0 0
        %772 = vmatpush.bf16.xpose.msra.mxu0 0
        %773 = vmatpush.bf16.xpose.msra.mxu0 0
        %774 = vmatpush.bf16.xpose.msra.mxu0 %v765
        %775 = vmatmul.bf16.gmra.mxu0 %v762
        %v776 = vpop.f32.mrf.mxu0
        %v777 = vadd.f32 %v444, %v776
        %v778 = vpop.f32.mrf.mxu0
        %779 = vdwg.mxu0
        %v780 = vsel %vm489, %v754, -inf
        %781 = vmax.xlane.f32.xlu0 %v780
        %v782 = vpop.xlane.xlu0 %781
        %v783 = vsel %vm489, %v777, -inf
        %784 = vmax.xlane.f32.xlu0 %v783
        %v785 = vpop.xlane.xlu0 %784
        %v786 = vsub.f32 %v754, %v782
        %v787 = vsub.f32 %v777, %v785
        %v788 = vmul.f32 %v786, 1.442695
        %v789 = vpow.pop %v788
        %v790 = vmul.f32 %v787, 1.442695
        %v791 = vpow.pop %v790
        %v792 = vsel %vm489, %v789, 0.0
        %793 = vadd.xlane.f32.xlu0 %v792
        %v794 = vpop.xlane.xlu0 %793
        %v795 = vsel %vm489, %v791, 0.0
        %796 = vadd.xlane.f32.xlu0 %v795
        %v797 = vpop.xlane.xlu0 %796
        %v798 = vadd.f32 %v794, 1e-30
        %v799 = vadd.f32 %v797, 1e-30
        %v800 = vrcp.pop %v798
        %v801 = vrcp.pop %v799
        %v802 = vmul.f32 %v789, %v800
        %v803 = vmul.f32 %v791, %v801
        %v804 = vpack.c.bf16 %v802, %v802
        %v805 = vpack.c.bf16 %v803, %v803
        %806 = vrot.lane.b32.xlu0 %v486, 48
        %v807 = vpop.permute.xlu0 %806
        %v809 = vsel %vm489, %v804, 0
        %v812 = vsel %vm564, %v807, 0
        %814 = vmatpush.bf16.msra.mxu0 0
        %815 = vmatpush.bf16.msra.mxu0 0
        %816 = vmatpush.bf16.msra.mxu0 0
        %817 = vmatpush.bf16.msra.mxu0 0
        %818 = vmatpush.bf16.msra.mxu0 0
        %819 = vmatpush.bf16.msra.mxu0 0
        %820 = vmatpush.bf16.msra.mxu0 0
        %821 = vmatpush.bf16.msra.mxu0 %v812
        %822 = vmatmul.bf16.gmra.mxu0 %v809
        %v823 = vpop.f32.mrf.mxu0
        %v824 = vadd.f32 0.0, %v823
        %v825 = vpop.f32.mrf.mxu0
        %826 = vdwg.mxu0
        %827 = vrot.lane.b32.xlu0 %v511, 48
        %v828 = vpop.permute.xlu0 %827
        %v830 = vsel %vm489, %v805, 0
        %v833 = vsel %vm564, %v828, 0
        %835 = vmatpush.bf16.msra.mxu0 0
        %836 = vmatpush.bf16.msra.mxu0 0
        %837 = vmatpush.bf16.msra.mxu0 0
        %838 = vmatpush.bf16.msra.mxu0 0
        %839 = vmatpush.bf16.msra.mxu0 0
        %840 = vmatpush.bf16.msra.mxu0 0
        %841 = vmatpush.bf16.msra.mxu0 0
        %842 = vmatpush.bf16.msra.mxu0 %v833
        %843 = vmatmul.bf16.gmra.mxu0 %v830
        %v844 = vpop.f32.mrf.mxu0
        %v845 = vadd.f32 0.0, %v844
        %v846 = vpop.f32.mrf.mxu0
        %847 = vdwg.mxu0
        %v848 = vpack.c.bf16 %v824, %v824
        %v849 = vpack.c.bf16 %v845, %v845
        %852 = vrot.lane.b32.xlu0 %v848, 16
        %v853 = vpop.permute.xlu0 %852
        %854 = vrot.lane.b32.xlu0 %v849, 16
        %v855 = vpop.permute.xlu0 %854
        %vm858 = vcmask 191616
        %859 = vst.msk [vmem:[#allocation2] sm:$0xf] %vm858, %v853
        %860 = vst.msk [vmem:[#allocation2 + $0x4] sm:$0xf] %vm858, %v855
        %861 = vrot.lane.b32.xlu0 %v486, 104
        %v862 = vpop.permute.xlu0 %861
        %863 = vrot.lane.b32.xlu0 %v486, 72
        %v864 = vpop.permute.xlu0 %863
        %v866 = vsel %vm489, %v862, 0
        %v869 = vsel %vm489, %v864, 0
        %871 = vmatpush.bf16.xpose.msra.mxu0 0
        %872 = vmatpush.bf16.xpose.msra.mxu0 0
        %873 = vmatpush.bf16.xpose.msra.mxu0 0
        %874 = vmatpush.bf16.xpose.msra.mxu0 0
        %875 = vmatpush.bf16.xpose.msra.mxu0 0
        %876 = vmatpush.bf16.xpose.msra.mxu0 0
        %877 = vmatpush.bf16.xpose.msra.mxu0 0
        %878 = vmatpush.bf16.xpose.msra.mxu0 %v869
        %879 = vmatmul.bf16.gmra.mxu0 %v866
        %v880 = vpop.f32.mrf.mxu0
        %v881 = vadd.f32 %v443, %v880
        %v882 = vpop.f32.mrf.mxu0
        %883 = vdwg.mxu0
        %884 = vrot.lane.b32.xlu0 %v511, 104
        %v885 = vpop.permute.xlu0 %884
        %886 = vrot.lane.b32.xlu0 %v511, 72
        %v887 = vpop.permute.xlu0 %886
        %v889 = vsel %vm489, %v885, 0
        %v892 = vsel %vm489, %v887, 0
        %894 = vmatpush.bf16.xpose.msra.mxu0 0
        %895 = vmatpush.bf16.xpose.msra.mxu0 0
        %896 = vmatpush.bf16.xpose.msra.mxu0 0
        %897 = vmatpush.bf16.xpose.msra.mxu0 0
        %898 = vmatpush.bf16.xpose.msra.mxu0 0
        %899 = vmatpush.bf16.xpose.msra.mxu0 0
        %900 = vmatpush.bf16.xpose.msra.mxu0 0
        %901 = vmatpush.bf16.xpose.msra.mxu0 %v892
        %902 = vmatmul.bf16.gmra.mxu0 %v889
        %v903 = vpop.f32.mrf.mxu0
        %v904 = vadd.f32 %v444, %v903
        %v905 = vpop.f32.mrf.mxu0
        %906 = vdwg.mxu0
        %v907 = vsel %vm489, %v881, -inf
        %908 = vmax.xlane.f32.xlu0 %v907
        %v909 = vpop.xlane.xlu0 %908
        %v910 = vsel %vm489, %v904, -inf
        %911 = vmax.xlane.f32.xlu0 %v910
        %v912 = vpop.xlane.xlu0 %911
        %v913 = vsub.f32 %v881, %v909
        %v914 = vsub.f32 %v904, %v912
        %v915 = vmul.f32 %v913, 1.442695
        %v916 = vpow.pop %v915
        %v917 = vmul.f32 %v914, 1.442695
        %v918 = vpow.pop %v917
        %v919 = vsel %vm489, %v916, 0.0
        %920 = vadd.xlane.f32.xlu0 %v919
        %v921 = vpop.xlane.xlu0 %920
        %v922 = vsel %vm489, %v918, 0.0
        %923 = vadd.xlane.f32.xlu0 %v922
        %v924 = vpop.xlane.xlu0 %923
        %v925 = vadd.f32 %v921, 1e-30
        %v926 = vadd.f32 %v924, 1e-30
        %v927 = vrcp.pop %v925
        %v928 = vrcp.pop %v926
        %v929 = vmul.f32 %v916, %v927
        %v930 = vmul.f32 %v918, %v928
        %v931 = vpack.c.bf16 %v929, %v929
        %v932 = vpack.c.bf16 %v930, %v930
        %933 = vrot.lane.b32.xlu0 %v486, 40
        %v934 = vpop.permute.xlu0 %933
        %v936 = vsel %vm489, %v931, 0
        %v939 = vsel %vm564, %v934, 0
        %941 = vmatpush.bf16.msra.mxu0 0
        %942 = vmatpush.bf16.msra.mxu0 0
        %943 = vmatpush.bf16.msra.mxu0 0
        %944 = vmatpush.bf16.msra.mxu0 0
        %945 = vmatpush.bf16.msra.mxu0 0
        %946 = vmatpush.bf16.msra.mxu0 0
        %947 = vmatpush.bf16.msra.mxu0 0
        %948 = vmatpush.bf16.msra.mxu0 %v939
        %949 = vmatmul.bf16.gmra.mxu0 %v936
        %v950 = vpop.f32.mrf.mxu0
        %v951 = vadd.f32 0.0, %v950
        %v952 = vpop.f32.mrf.mxu0
        %953 = vdwg.mxu0
        %954 = vrot.lane.b32.xlu0 %v511, 40
        %v955 = vpop.permute.xlu0 %954
        %v957 = vsel %vm489, %v932, 0
        %v960 = vsel %vm564, %v955, 0
        %962 = vmatpush.bf16.msra.mxu0 0
        %963 = vmatpush.bf16.msra.mxu0 0
        %964 = vmatpush.bf16.msra.mxu0 0
        %965 = vmatpush.bf16.msra.mxu0 0
        %966 = vmatpush.bf16.msra.mxu0 0
        %967 = vmatpush.bf16.msra.mxu0 0
        %968 = vmatpush.bf16.msra.mxu0 0
        %969 = vmatpush.bf16.msra.mxu0 %v960
        %970 = vmatmul.bf16.gmra.mxu0 %v957
        %v971 = vpop.f32.mrf.mxu0
        %v972 = vadd.f32 0.0, %v971
        %v973 = vpop.f32.mrf.mxu0
        %974 = vdwg.mxu0
        %v975 = vpack.c.bf16 %v951, %v951
        %v976 = vpack.c.bf16 %v972, %v972
        %979 = vrot.lane.b32.xlu0 %v975, 24
        %v980 = vpop.permute.xlu0 %979
        %981 = vrot.lane.b32.xlu0 %v976, 24
        %v982 = vpop.permute.xlu0 %981
        %vm985 = vcmask 257216
        %986 = vst.msk [vmem:[#allocation2] sm:$0xf] %vm985, %v980
        %987 = vst.msk [vmem:[#allocation2 + $0x4] sm:$0xf] %vm985, %v982
        %v988 = vld [vmem:[#allocation2] sm:$0xf]
        %v989 = vld [vmem:[#allocation2 + $0x4] sm:$0xf]
        %v990 = vld [vmem:[%s419] sm:$0xf]
        %v991 = vld [vmem:[%s419 + $0x4] sm:$0xf]
        %v992 = vld [vmem:[%s419 + $0x8] sm:$0xf]
        %v993 = vld [vmem:[%s419 + $0xc] sm:$0xf]
        %v994 = vperm.slane %v445, 1
        %v997 = vunpack.c.l.b16 %v988
        %v998 = vunpack.c.l.b16 %v989
        %v999 = vpack.c.b16 %v998, %v997
        %v1004 = vunpack.c.l.b16 %v990
        %v1005 = vunpack.c.l.b16 %v991
        %v1006 = vunpack.c.l.b16 %v992
        %v1007 = vunpack.c.l.b16 %v993
        %v1008 = vpack.c.b16 %v1005, %v1004
        %v1009 = vpack.c.b16 %v1007, %v1006
        %v1013 = vsel %vm464, %v999, 0
        %1015 = vmatpush.bf16.msra.mxu0 0
        %1016 = vmatpush.bf16.msra.mxu0 0
        %1017 = vmatpush.bf16.msra.mxu0 0
        %1018 = vmatpush.bf16.msra.mxu0 0
        %1019 = vmatpush.bf16.msra.mxu0 0
        %1020 = vmatpush.bf16.msra.mxu0 0
        %1021 = vmatpush.bf16.msra.mxu0 %v1009
        %1022 = vmatpush.bf16.msra.mxu0 %v1008
        %1023 = vmatmul.bf16.gmra.mxu0 %v1013
        %v1024 = vpop.f32.mrf.mxu0
        %v1025 = vadd.f32 %v994, %v1024
        %v1026 = vpop.f32.mrf.mxu0
        %v1027 = vadd.f32 %v994, %v1026
        %1028 = vdwg.mxu0
        %v1029 = vadd.f32 %v1025, %v441
        %v1030 = vadd.f32 %v1027, %v442
        %v1031 = vsel %vm464, %v1029, 0.0
        %1032 = vadd.xlane.f32.xlu0 %v1031
        %v1033 = vpop.xlane.xlu0 %1032
        %v1034 = vsel %vm464, %v1030, 0.0
        %1035 = vadd.xlane.f32.xlu0 %v1034
        %v1036 = vpop.xlane.xlu0 %1035
        %v1037 = vrcp.pop 32.0
        %v1038 = vmul.f32 32.0, %v1037
        %v1039 = vsub.f32 1.0, %v1038
        %v1040 = vmul.f32 %v1037, %v1039
        %v1041 = vadd.f32 %v1037, %v1040
        %vm1042 = vweird.f32 %v1037
        %v1043 = vsel %vm1042, %v1037, %v1041
        %v1044 = vmul.f32 %v1033, %v1043
        %v1045 = vmul.f32 %v1036, %v1043
        %v1046 = vmul.f32 %v1029, %v1029
        %v1047 = vmul.f32 %v1030, %v1030
        %v1048 = vsel %vm464, %v1046, 0.0
        %1049 = vadd.xlane.f32.xlu0 %v1048
        %v1050 = vpop.xlane.xlu0 %1049
        %v1051 = vsel %vm464, %v1047, 0.0
        %1052 = vadd.xlane.f32.xlu0 %v1051
        %v1053 = vpop.xlane.xlu0 %1052
        %v1054 = vmul.f32 %v1050, %v1043
        %v1055 = vmul.f32 %v1053, %v1043
        %v1056 = vmul.f32 %v1044, %v1044
        %v1057 = vmul.f32 %v1045, %v1045
        %v1058 = vsub.f32 %v1054, %v1056
        %v1059 = vsub.f32 %v1055, %v1057
        %v1060 = vmax.f32 %v1058, 0.0
        %v1061 = vmax.f32 %v1059, 0.0
        %v1062 = vsub.f32 %v1029, %v1044
        %v1063 = vsub.f32 %v1030, %v1045
        %v1064 = vadd.f32 %v1060, 1e-05
        %v1065 = vadd.f32 %v1061, 1e-05
        %v1066 = vrsqrt.pop %v1064
        %v1067 = vmul.f32 %v1066, %v1064
        %v1068 = vmul.f32 %v1067, %v1066
        %v1069 = vmul.f32 0.5, %v1068
        %v1070 = vsub.f32 1.5, %v1069
        %v1071 = vmul.f32 %v1066, %v1070
        %vm1072 = vweird.f32 %v1064
        %vm1073 = vweird.f32 %v1066
        %vm1074 = vmor %vm1072, %vm1073
        %v1075 = vsel %vm1074, %v1066, %v1071
        %v1076 = vrsqrt.pop %v1065
        %v1077 = vmul.f32 %v1076, %v1065
        %v1078 = vmul.f32 %v1077, %v1076
        %v1079 = vmul.f32 0.5, %v1078
        %v1080 = vsub.f32 1.5, %v1079
        %v1081 = vmul.f32 %v1076, %v1080
        %vm1082 = vweird.f32 %v1065
        %vm1083 = vweird.f32 %v1076
        %vm1084 = vmor %vm1082, %vm1083
        %v1085 = vsel %vm1084, %v1076, %v1081
        %v1086 = vmul.f32 %v1062, %v1075
        %v1087 = vmul.f32 %v1063, %v1085
        %v1088 = vperm.slane %v445, 2
        %v1089 = vmul.f32 %v1088, %v1086
        %v1090 = vmul.f32 %v1088, %v1087
        %v1091 = vperm.slane %v445, 3
        %v1092 = vadd.f32 %v1089, %v1091
        %v1093 = vadd.f32 %v1090, %v1091
        %v1094 = vpack.c.bf16 %v1093, %v1092
        %v1095 = vld [vmem:[%s424] sm:$0xf]
        %v1096 = vld [vmem:[%s424 + $0x4] sm:$0xf]
        %v1097 = vld [vmem:[%s424 + $0x8] sm:$0xf]
        %v1098 = vld [vmem:[%s424 + $0xc] sm:$0xf]
        %v1099 = vperm.slane %v445, 4
        %v1104 = vunpack.c.l.b16 %v1095
        %v1105 = vunpack.c.l.b16 %v1096
        %v1106 = vunpack.c.l.b16 %v1097
        %v1107 = vunpack.c.l.b16 %v1098
        %v1108 = vpack.c.b16 %v1105, %v1104
        %v1109 = vpack.c.b16 %v1107, %v1106
        %v1113 = vsel %vm464, %v1094, 0
        %1115 = vmatpush.bf16.msra.mxu0 0
        %1116 = vmatpush.bf16.msra.mxu0 0
        %1117 = vmatpush.bf16.msra.mxu0 0
        %1118 = vmatpush.bf16.msra.mxu0 0
        %1119 = vmatpush.bf16.msra.mxu0 0
        %1120 = vmatpush.bf16.msra.mxu0 0
        %1121 = vmatpush.bf16.msra.mxu0 %v1109
        %1122 = vmatpush.bf16.msra.mxu0 %v1108
        %1123 = vmatmul.bf16.gmra.mxu0 %v1113
        %v1124 = vpop.f32.mrf.mxu0
        %v1125 = vadd.f32 %v1099, %v1124
        %v1126 = vpop.f32.mrf.mxu0
        %v1127 = vadd.f32 %v1099, %v1126
        %1128 = vdwg.mxu0
        %v1129 = vmax.f32 %v1125, 0.0
        %v1130 = vmax.f32 %v1127, 0.0
        %v1131 = vpack.c.bf16 %v1130, %v1129
        %v1132 = vld [vmem:[%s429] sm:$0xf]
        %v1133 = vld [vmem:[%s429 + $0x4] sm:$0xf]
        %v1134 = vld [vmem:[%s429 + $0x8] sm:$0xf]
        %v1135 = vld [vmem:[%s429 + $0xc] sm:$0xf]
        %v1136 = vld [vmem:[%s429 + $0x10] sm:$0xf]
        %v1137 = vld [vmem:[%s429 + $0x14] sm:$0xf]
        %v1138 = vld [vmem:[%s429 + $0x18] sm:$0xf]
        %v1139 = vld [vmem:[%s429 + $0x1c] sm:$0xf]
        %v1140 = vperm.slane %v445, 5
        %v1149 = vunpack.c.l.b16 %v1132
        %v1150 = vunpack.c.l.b16 %v1133
        %v1151 = vunpack.c.l.b16 %v1134
        %v1152 = vunpack.c.l.b16 %v1135
        %v1153 = vunpack.c.l.b16 %v1136
        %v1154 = vunpack.c.l.b16 %v1137
        %v1155 = vunpack.c.l.b16 %v1138
        %v1156 = vunpack.c.l.b16 %v1139
        %v1157 = vpack.c.b16 %v1150, %v1149
        %v1158 = vpack.c.b16 %v1152, %v1151
        %v1159 = vpack.c.b16 %v1154, %v1153
        %v1160 = vpack.c.b16 %v1156, %v1155
        %vm1165 = vcmask 523264
        %v1167 = vsel %vm1165, %v1131, 0
        %1169 = vmatpush.bf16.msra.mxu0 0
        %1170 = vmatpush.bf16.msra.mxu0 0
        %1171 = vmatpush.bf16.msra.mxu0 0
        %1172 = vmatpush.bf16.msra.mxu0 0
        %1173 = vmatpush.bf16.msra.mxu0 %v1160
        %1174 = vmatpush.bf16.msra.mxu0 %v1159
        %1175 = vmatpush.bf16.msra.mxu0 %v1158
        %1176 = vmatpush.bf16.msra.mxu0 %v1157
        %1177 = vmatmul.bf16.gmra.mxu0 %v1167
        %v1178 = vpop.f32.mrf.mxu0
        %v1179 = vadd.f32 %v1140, %v1178
        %v1180 = vpop.f32.mrf.mxu0
        %v1181 = vadd.f32 %v1140, %v1180
        %1182 = vdwg.mxu0
        %v1183 = vadd.f32 %v1179, %v1092
        %v1184 = vadd.f32 %v1181, %v1093
        %v1185 = vsel %vm464, %v1183, 0.0
        %1186 = vadd.xlane.f32.xlu0 %v1185
        %v1187 = vpop.xlane.xlu0 %1186
        %v1188 = vsel %vm464, %v1184, 0.0
        %1189 = vadd.xlane.f32.xlu0 %v1188
        %v1190 = vpop.xlane.xlu0 %1189
        %v1191 = vmul.f32 %v1187, %v1043
        %v1192 = vmul.f32 %v1190, %v1043
        %v1193 = vmul.f32 %v1183, %v1183
        %v1194 = vmul.f32 %v1184, %v1184
        %v1195 = vsel %vm464, %v1193, 0.0
        %1196 = vadd.xlane.f32.xlu0 %v1195
        %v1197 = vpop.xlane.xlu0 %1196
        %v1198 = vsel %vm464, %v1194, 0.0
        %1199 = vadd.xlane.f32.xlu0 %v1198
        %v1200 = vpop.xlane.xlu0 %1199
        %v1201 = vmul.f32 %v1197, %v1043
        %v1202 = vmul.f32 %v1200, %v1043
        %v1203 = vmul.f32 %v1191, %v1191
        %v1204 = vmul.f32 %v1192, %v1192
        %v1205 = vsub.f32 %v1201, %v1203
        %v1206 = vsub.f32 %v1202, %v1204
        %v1207 = vmax.f32 %v1205, 0.0
        %v1208 = vmax.f32 %v1206, 0.0
        %v1209 = vsub.f32 %v1183, %v1191
        %v1210 = vsub.f32 %v1184, %v1192
        %v1211 = vadd.f32 %v1207, 1e-05
        %v1212 = vadd.f32 %v1208, 1e-05
        %v1213 = vrsqrt.pop %v1211
        %v1214 = vmul.f32 %v1213, %v1211
        %v1215 = vmul.f32 %v1214, %v1213
        %v1216 = vmul.f32 0.5, %v1215
        %v1217 = vsub.f32 1.5, %v1216
        %v1218 = vmul.f32 %v1213, %v1217
        %vm1219 = vweird.f32 %v1211
        %vm1220 = vweird.f32 %v1213
        %vm1221 = vmor %vm1219, %vm1220
        %v1222 = vsel %vm1221, %v1213, %v1218
        %v1223 = vrsqrt.pop %v1212
        %v1224 = vmul.f32 %v1223, %v1212
        %v1225 = vmul.f32 %v1224, %v1223
        %v1226 = vmul.f32 0.5, %v1225
        %v1227 = vsub.f32 1.5, %v1226
        %v1228 = vmul.f32 %v1223, %v1227
        %vm1229 = vweird.f32 %v1212
        %vm1230 = vweird.f32 %v1223
        %vm1231 = vmor %vm1229, %vm1230
        %v1232 = vsel %vm1231, %v1223, %v1228
        %v1233 = vmul.f32 %v1209, %v1222
        %v1234 = vmul.f32 %v1210, %v1232
        %v1235 = vperm.slane %v445, 6
        %v1236 = vmul.f32 %v1235, %v1233
        %v1237 = vmul.f32 %v1235, %v1234
        %v1238 = vperm.slane %v445, 7
        %v1239 = vadd.f32 %v1236, %v1238
        %v1240 = vadd.f32 %v1237, %v1238
        %1241 = vst.msk [vmem:[#allocation9] sm:$0xff] %vm464, %v1239
        %1242 = vst.msk [vmem:[#allocation9 + $0x8] sm:$0xff] %vm464, %v1240
        // Predicated region
        $region65: #{tpu_custom_call.1} parent=47 // pred_check
          %p1243 = pneg %p233
        $region66: #{tpu_custom_call.1} parent=47 // pred_check_branch
          %1245 = sbr.rel (%p1243) target = $region68
        $region67: #{tpu_custom_call.1} parent=47 // pred_region
          %s1246 = smul.u32 2, %s25
          %1248 = vsyncadd [#allocation5], 0
          %s1249 = smul.addr %s1246, 8
          %s1250 = scalar_lea.hbm %s7, %s1249
          %s1251 = sshll.u32 [#allocation9], 4
          %s1252 = int_to_ptr.vmem [resolvable:$true] %s1251
          %s1253 = sshll.u32 %s1250, 4
          %s1254 = int_to_ptr.hbm [resolvable:$true] %s1253
          %1259 = dma.vmem_to_hbm [thread:$0]  %s1252, 256, %s1254, [#allocation5], 128, 128, 8
        $region68: #{tpu_custom_call.1} parent=47 // pred_fallthru
          _
        // Predicated region
        $region69: #{tpu_custom_call.1} parent=47 // pred_check
          %p1260 = pneg %p233
        $region70: #{tpu_custom_call.1} parent=47 // pred_check_branch
          %1262 = sbr.rel (%p1260) target = $region72
        $region71: #{tpu_custom_call.1} parent=47 // pred_region
          %1264 = dma.done [#allocation5], 256
        $region72: #{tpu_custom_call.1} parent=47 // pred_fallthru
          _
      $region48: #{tpu_custom_call.1} parent=5 // pred_fallthru
        _
      %p1265 = scmp.le.s32.totalorder 2, %s16
      // Predicated region
      $region73: #{tpu_custom_call.1} parent=5 // pred_check
        %p1266 = pneg %p1265
      $region74: #{tpu_custom_call.1} parent=5 // pred_check_branch
        %1268 = sbr.rel (%p1266) target = $region76
      $region75: #{tpu_custom_call.1} parent=5 // pred_region
        %s1269 = ssub.s32 %s16, 2
      $region76: #{tpu_custom_call.1} parent=5 // pred_fallthru
        _
    $region6: #{tpu_custom_call.1} parent=1 // loop_footer
      %s20 = sadd.s32 1, %s16
    $region7: #{tpu_custom_call.1} parent=1 // loop_footer_branch
      %15 = sbr.rel target = $region3
    $region8: #{tpu_custom_call.1} parent=1 // loop_exit
      _
    %1270 = vsyncpa [#allocation4], 1
    %s1271 = scalar_lea.sflag [#allocation4], 1
    %1272 = vsyncpa %s1271, 1
    %1273 = vsyncpa [#allocation7], 1
    %1274 = vsyncpa [#allocation5], 1
    %s1275 = scalar_lea.sflag [#allocation5], 1
    %1276 = vsyncpa %s1275, 1

</llo_original>
